<compile_context>
chip_gen: v7x
topology: tpu7x:2x2x1
jax: 0.10.0
libtpu: 0.0.40
codegen_flags: <defaults>
</compile_context>

<pallas_src>
import math
import functools

import jax
import jax.numpy as jnp
from jax.experimental import pallas as pl
from jax.experimental.pallas import tpu as pltpu

# ----------------------------- config ---------------------------------------
B = 2             # batch
S = 8             # sequence length
D = 32            # d_model
H = 4             # num_heads
DV = D // H       # head dim
DFF = 64          # d_ff
LN_EPS = 1e-5     # nn.LayerNorm default
OUT_LANES = 128   # lane-padded kernel output width (lane-dense store)


# ----------------------------- kernel ---------------------------------------
def encoder_block_kernel(
    x_ref,      # (B*S, D)          f32
    mask_ref,   # (H*B, S, S)       f32; 1.0 == masked (score -> 1e-9)
    wqkv_ref,   # (D, 3*D)          bf16: [Wq/sqrt(dv) | Wk | Wv]
    bqkv_ref,   # (1, 3*D)          f32 : [bq/sqrt(dv) | bk | bv]
    wo_ref,     # (D, D)            bf16
    w1_ref,     # (D, DFF)          bf16
    b1_ref,     # (1, DFF)          f32
    w2_ref,     # (DFF, D)          bf16
    vec_ref,    # (6, D)            f32 rows: [b_o, ln1_g, ln1_b, ln2_g, ln2_b, b2]
    out_ref,    # (B*S, OUT_LANES)  f32 (first D lanes valid)
    *, batch, seq, num_heads, d_model, d_v,
):
    rows = batch * seq
    f32 = jnp.float32
    bf16 = jnp.bfloat16

    x = x_ref[...].astype(f32)                                  # (rows, D)
    vecs = vec_ref[...].astype(f32)                             # (6, D)
    bo, ln1_g, ln1_b, ln2_g, ln2_b, b2 = (vecs[i:i + 1, :] for i in range(6))

    def layernorm(h, g, b):                                     # f32 elementwise
        mu = jnp.mean(h, axis=-1, keepdims=True)
        var = jnp.mean((h - mu) ** 2, axis=-1, keepdims=True)
        return (h - mu) * jax.lax.rsqrt(var + LN_EPS) * g + b

    # ---------------- residual 1: pre-norm multi-head attention -------------
    h1 = layernorm(x, ln1_g, ln1_b)                             # (rows, D)

    # Single un-batched fused QKV projection (bf16 operands, f32 accumulate).
    qkv = jnp.dot(h1.astype(bf16), wqkv_ref[...],
                  preferred_element_type=f32) + bqkv_ref[...]   # (rows, 3D)
    q2d = qkv[:, 0 * d_model:1 * d_model]                       # scale pre-folded
    k2d = qkv[:, 1 * d_model:2 * d_model]
    v2d = qkv[:, 2 * d_model:3 * d_model]

    # Split heads/batch onto a single leading batch axis (index = h*B + b)
    # using only lane/sublane slices + a major-axis stack (no transposes).
    def to_batched(t2d):
        return jnp.stack(
            [t2d[b * seq:(b + 1) * seq, h * d_v:(h + 1) * d_v]
             for h in range(num_heads) for b in range(batch)],
            axis=0)                                             # (H*B, S, DV)

    q_b = to_batched(q2d)
    k_b = to_batched(k2d)
    v_b = to_batched(v2d)

    # scores: one batched 'bqd,bkd->bqk' (1/sqrt(d_v) already folded into Wq)
    s = jax.lax.dot_general(
        q_b.astype(bf16), k_b.astype(bf16),
        dimension_numbers=(((2,), (2,)), ((0,), (0,))),
        preferred_element_type=f32)                             # (H*B, S, S)

    # PyTorch: attention_scores.masked_fill_(mask, 1e-09)  (compare-free select)
    m = mask_ref[...].astype(f32)
    s = s * (1.0 - m) + m * f32(1e-9)

    # numerically-stable softmax in f32 with exact reciprocal
    s = s - jnp.max(s, axis=-1, keepdims=True)
    p = jnp.exp(s)
    p = p / jnp.sum(p, axis=-1, keepdims=True)

    # context: one batched 'bqk,bkd->bqd'
    ctx = jax.lax.dot_general(
        p.astype(bf16), v_b.astype(bf16),
        dimension_numbers=(((2,), (1,)), ((0,), (0,))),
        preferred_element_type=f32)                             # (H*B, S, DV)

    # Merge heads back onto the lane axis -> (rows, D); single W_o matmul (K=D).
    ctx2d = jnp.concatenate(
        [jnp.concatenate([ctx[h * batch + b] for b in range(batch)], axis=0)
         for h in range(num_heads)],
        axis=-1)                                                # (rows, D)

    attn = jnp.dot(ctx2d.astype(bf16), wo_ref[...],
                   preferred_element_type=f32) + bo             # (rows, D)
    x1 = x + attn

    # ---------------- residual 2: pre-norm feed-forward ----------------------
    h2 = layernorm(x1, ln2_g, ln2_b)
    ff = jnp.dot(h2.astype(bf16), w1_ref[...],
                 preferred_element_type=f32) + b1_ref[...]
    ff = jnp.maximum(ff, 0.0)
    ff = jnp.dot(ff.astype(bf16), w2_ref[...],
                 preferred_element_type=f32) + b2

    res = x1 + ff                                               # (rows, D)

    # Lane-dense store: pad last dim to 128 lanes (unmasked vst); the wrapper
    # slices the valid D columns back out.
    pad = jnp.zeros((rows, out_ref.shape[-1] - d_model), f32)
    out_ref[...] = jnp.concatenate([res, pad], axis=-1).astype(out_ref.dtype)


# ----------------------------- wrapper ---------------------------------------
def encoder_block(x, mask, params):
    """x: (B, S, D) f32; mask: (B, S, S) int32 (nonzero == masked); params: dict."""
    Bc, Sc, Dc = x.shape
    Hc = H
    DVc = Dc // Hc
    scale = 1.0 / math.sqrt(DVc)

    # ---- host-side parameter packing (free relative to the kernel) ---------
    # Fold the 1/sqrt(d_v) score scale into the Q projection (weight + bias).
    wqkv = jnp.concatenate(
        [params["wq"] * scale, params["wk"], params["wv"]], axis=1
    ).astype(jnp.bfloat16)                                      # (D, 3D)
    bqkv = jnp.concatenate(
        [params["bq"] * scale, params["bk"], params["bv"]], axis=1)  # (1, 3D) f32
    wo = params["wo"].astype(jnp.bfloat16)                      # (D, D)
    w1 = params["w1"].astype(jnp.bfloat16)                      # (D, DFF)
    w2 = params["w2"].astype(jnp.bfloat16)                      # (DFF, D)
    vecs = jnp.concatenate(
        [params["bo"], params["ln1_g"], params["ln1_b"],
         params["ln2_g"], params["ln2_b"], params["b2"]], axis=0)    # (6, D) f32

    # Pre-fold the mask compare into a float select mask, replicated over heads
    # so the kernel applies it with one compare-free batched blend.
    mask_f = (mask > 0).astype(jnp.float32)                     # (B, S, S)
    mask_hb = jnp.broadcast_to(
        mask_f[None], (Hc, Bc, Sc, Sc)).reshape(Hc * Bc, Sc, Sc)

    x2d = x.reshape(Bc * Sc, Dc)                                # one gridless step

    kernel = functools.partial(
        encoder_block_kernel, batch=Bc, seq=Sc, num_heads=Hc,
        d_model=Dc, d_v=DVc)

    vmem = pl.BlockSpec(memory_space=pltpu.MemorySpace.VMEM)
    out_pad = pl.pallas_call(
        kernel,
        out_shape=jax.ShapeDtypeStruct((Bc * Sc, OUT_LANES), x.dtype),
        in_specs=[vmem] * 9,
        out_specs=vmem,
    )(x2d, mask_hb, wqkv, bqkv, wo, w1, params["b1"], w2, vecs)
    return out_pad[:, :Dc].reshape(Bc, Sc, Dc)


# ----------------------------- reference (pure JAX, f32) ----------------------
def encoder_block_ref(x, mask, p):
    Bc, Sc, Dc = x.shape

    def layernorm(h, g, b):
        mu = jnp.mean(h, axis=-1, keepdims=True)
        var = jnp.mean((h - mu) ** 2, axis=-1, keepdims=True)
        return (h - mu) / jnp.sqrt(var + LN_EPS) * g + b

    h = layernorm(x, p["ln1_g"], p["ln1_b"])
    q = h @ p["wq"] + p["bq"]
    k = h @ p["wk"] + p["bk"]
    v = h @ p["wv"] + p["bv"]

    def split(t):
        return t.reshape(Bc, Sc, H, DV).transpose(0, 2, 1, 3)

    qh, kh, vh = split(q), split(k), split(v)
    s = jnp.einsum("bhqd,bhkd->bhqk", qh, kh) / math.sqrt(DV)
    s = jnp.where((mask > 0)[:, None, :, :], 1e-9, s)
    a = jax.nn.softmax(s, axis=-1)
    ctx = jnp.einsum("bhqk,bhkd->bhqd", a, vh).transpose(0, 2, 1, 3).reshape(Bc, Sc, Dc)
    x1 = x + (ctx @ p["wo"] + p["bo"])

    h2 = layernorm(x1, p["ln2_g"], p["ln2_b"])
    ff = jnp.maximum(h2 @ p["w1"] + p["b1"], 0.0) @ p["w2"] + p["b2"]
    return x1 + ff


# ----------------------------- main -------------------------------------------
if __name__ == "__main__":
    root = jax.random.PRNGKey(0)
    keys = jax.random.split(root, 14)

    def init(k, shape, scale=0.05):
        return (scale * jax.random.normal(k, shape)).astype(jnp.float32)

    params = {
        "wq": init(keys[0], (D, D)),   "bq": init(keys[1], (1, D)),
        "wk": init(keys[2], (D, D)),   "bk": init(keys[3], (1, D)),
        "wv": init(keys[4], (D, D)),   "bv": init(keys[5], (1, D)),
        "wo": init(keys[6], (D, D)),   "bo": init(keys[7], (1, D)),
        "ln1_g": jnp.ones((1, D), jnp.float32),
        "ln1_b": jnp.zeros((1, D), jnp.float32),
        "ln2_g": jnp.ones((1, D), jnp.float32),
        "ln2_b": jnp.zeros((1, D), jnp.float32),
        "w1": init(keys[8], (D, DFF)), "b1": init(keys[9], (1, DFF)),
        "w2": init(keys[10], (DFF, D)), "b2": init(keys[11], (1, D)),
    }

    x = jax.random.normal(keys[12], (B, S, D), jnp.float32)
    # mask[b, i, j] != 0 means "masked" (score replaced by 1e-9 before softmax,
    # exactly mirroring torch masked_fill_(mask, 1e-9)). Causal-style pattern.
    tri = (jnp.arange(S)[:, None] < jnp.arange(S)[None, :]).astype(jnp.int32)
    mask = jnp.broadcast_to(tri, (B, S, S))

    out = encoder_block(x, mask, params)
    jax.block_until_ready(out)

    ref = encoder_block_ref(x, mask, params)
    assert out.shape == (B, S, D)
    # Tolerance covers bf16 MXU operand rounding (accumulation is f32; all
    # LayerNorm/softmax elementwise math is f32; reciprocal is exact).
    max_err = float(jnp.max(jnp.abs(out - ref)))
    assert jnp.allclose(out, ref, atol=2e-2, rtol=2e-2), \
        f"mismatch vs ref (max abs err {max_err})"

    print("KERNEL_OK")
</pallas_src>

<mosaic_0001>
module attributes {stable_mosaic.version = 11 : i64} {
  func.func @encoder_block_kernel(%arg0: memref<16x32xf32, #tpu.memory_space<vmem>>, %arg1: memref<8x8x8xf32, #tpu.memory_space<vmem>>, %arg2: memref<32x96xbf16, #tpu.memory_space<vmem>>, %arg3: memref<1x96xf32, #tpu.memory_space<vmem>>, %arg4: memref<32x32xbf16, #tpu.memory_space<vmem>>, %arg5: memref<32x64xbf16, #tpu.memory_space<vmem>>, %arg6: memref<1x64xf32, #tpu.memory_space<vmem>>, %arg7: memref<64x32xbf16, #tpu.memory_space<vmem>>, %arg8: memref<6x32xf32, #tpu.memory_space<vmem>>, %arg9: memref<16x128xf32, #tpu.memory_space<vmem>>) attributes {dimension_semantics = [], scalar_prefetch = 0 : i64, scratch_operands = 0 : i64, tpu.core_type = #tpu.core_type<tc>} {
    %c0 = arith.constant 0 : index
    %c0_0 = arith.constant 0 : index
    %0 = vector.load %arg0[%c0, %c0_0] : memref<16x32xf32, #tpu.memory_space<vmem>>, vector<16x32xf32>
    %c0_1 = arith.constant 0 : index
    %c0_2 = arith.constant 0 : index
    %1 = vector.load %arg8[%c0_1, %c0_2] : memref<6x32xf32, #tpu.memory_space<vmem>>, vector<6x32xf32>
    %2 = vector.extract_strided_slice %1 {offsets = [0, 0], sizes = [1, 32], strides = [1, 1]} : vector<6x32xf32> to vector<1x32xf32>
    %3 = vector.extract_strided_slice %1 {offsets = [1, 0], sizes = [1, 32], strides = [1, 1]} : vector<6x32xf32> to vector<1x32xf32>
    %4 = vector.extract_strided_slice %1 {offsets = [2, 0], sizes = [1, 32], strides = [1, 1]} : vector<6x32xf32> to vector<1x32xf32>
    %5 = vector.extract_strided_slice %1 {offsets = [3, 0], sizes = [1, 32], strides = [1, 1]} : vector<6x32xf32> to vector<1x32xf32>
    %6 = vector.extract_strided_slice %1 {offsets = [4, 0], sizes = [1, 32], strides = [1, 1]} : vector<6x32xf32> to vector<1x32xf32>
    %7 = vector.extract_strided_slice %1 {offsets = [5, 0], sizes = [1, 32], strides = [1, 1]} : vector<6x32xf32> to vector<1x32xf32>
    %cst = arith.constant dense<0.000000e+00> : vector<16xf32>
    %8 = vector.multi_reduction <add>, %0, %cst [1] : vector<16x32xf32> to vector<16xf32>
    %9 = vector.shape_cast %8 : vector<16xf32> to vector<16x1xf32>
    %cst_3 = arith.constant 3.200000e+01 : f32
    %10 = vector.broadcast %cst_3 : f32 to vector<16x1xf32>
    %11 = arith.divf %9, %10 : vector<16x1xf32>
    %12 = vector.broadcast %11 : vector<16x1xf32> to vector<16x32xf32>
    %13 = arith.subf %0, %12 : vector<16x32xf32>
    %14 = arith.mulf %13, %13 : vector<16x32xf32>
    %cst_4 = arith.constant dense<0.000000e+00> : vector<16xf32>
    %15 = vector.multi_reduction <add>, %14, %cst_4 [1] : vector<16x32xf32> to vector<16xf32>
    %16 = vector.shape_cast %15 : vector<16xf32> to vector<16x1xf32>
    %cst_5 = arith.constant 3.200000e+01 : f32
    %17 = vector.broadcast %cst_5 : f32 to vector<16x1xf32>
    %18 = arith.divf %16, %17 : vector<16x1xf32>
    %19 = vector.broadcast %11 : vector<16x1xf32> to vector<16x32xf32>
    %20 = arith.subf %0, %19 : vector<16x32xf32>
    %cst_6 = arith.constant 9.99999974E-6 : f32
    %21 = vector.broadcast %cst_6 : f32 to vector<16x1xf32>
    %22 = arith.addf %18, %21 : vector<16x1xf32>
    %23 = math.rsqrt %22 : vector<16x1xf32>
    %24 = vector.broadcast %23 : vector<16x1xf32> to vector<16x32xf32>
    %25 = arith.mulf %20, %24 : vector<16x32xf32>
    %26 = vector.broadcast %3 : vector<1x32xf32> to vector<16x32xf32>
    %27 = arith.mulf %25, %26 : vector<16x32xf32>
    %28 = vector.broadcast %4 : vector<1x32xf32> to vector<16x32xf32>
    %29 = arith.addf %27, %28 : vector<16x32xf32>
    %30 = arith.truncf %29 : vector<16x32xf32> to vector<16x32xbf16>
    %c0_7 = arith.constant 0 : index
    %c0_8 = arith.constant 0 : index
    %31 = vector.load %arg2[%c0_7, %c0_8] : memref<32x96xbf16, #tpu.memory_space<vmem>>, vector<32x96xbf16>
    %cst_9 = arith.constant dense<0.000000e+00> : vector<16x96xf32>
    %32 = tpu.matmul %30, %31, %cst_9 {dimension_numbers = #tpu.dot_dimension_numbers<[1], [0], [0], [1], [0, 0, 1, 1], [], []>} : vector<16x32xbf16>, vector<32x96xbf16>, vector<16x96xf32> -> vector<16x96xf32>
    %c0_10 = arith.constant 0 : index
    %c0_11 = arith.constant 0 : index
    %33 = vector.load %arg3[%c0_10, %c0_11] : memref<1x96xf32, #tpu.memory_space<vmem>>, vector<1x96xf32>
    %34 = vector.broadcast %33 : vector<1x96xf32> to vector<16x96xf32>
    %35 = arith.addf %32, %34 : vector<16x96xf32>
    %36 = vector.extract_strided_slice %35 {offsets = [0, 0], sizes = [16, 32], strides = [1, 1]} : vector<16x96xf32> to vector<16x32xf32>
    %37 = vector.extract_strided_slice %35 {offsets = [0, 32], sizes = [16, 32], strides = [1, 1]} : vector<16x96xf32> to vector<16x32xf32>
    %38 = vector.extract_strided_slice %35 {offsets = [0, 64], sizes = [16, 32], strides = [1, 1]} : vector<16x96xf32> to vector<16x32xf32>
    %39 = vector.extract_strided_slice %36 {offsets = [0, 0], sizes = [8, 8], strides = [1, 1]} : vector<16x32xf32> to vector<8x8xf32>
    %40 = vector.extract_strided_slice %36 {offsets = [8, 0], sizes = [8, 8], strides = [1, 1]} : vector<16x32xf32> to vector<8x8xf32>
    %41 = vector.extract_strided_slice %36 {offsets = [0, 8], sizes = [8, 8], strides = [1, 1]} : vector<16x32xf32> to vector<8x8xf32>
    %42 = vector.extract_strided_slice %36 {offsets = [8, 8], sizes = [8, 8], strides = [1, 1]} : vector<16x32xf32> to vector<8x8xf32>
    %43 = vector.extract_strided_slice %36 {offsets = [0, 16], sizes = [8, 8], strides = [1, 1]} : vector<16x32xf32> to vector<8x8xf32>
    %44 = vector.extract_strided_slice %36 {offsets = [8, 16], sizes = [8, 8], strides = [1, 1]} : vector<16x32xf32> to vector<8x8xf32>
    %45 = vector.extract_strided_slice %36 {offsets = [0, 24], sizes = [8, 8], strides = [1, 1]} : vector<16x32xf32> to vector<8x8xf32>
    %46 = vector.extract_strided_slice %36 {offsets = [8, 24], sizes = [8, 8], strides = [1, 1]} : vector<16x32xf32> to vector<8x8xf32>
    %47 = vector.shape_cast %39 : vector<8x8xf32> to vector<1x8x8xf32>
    %48 = vector.shape_cast %40 : vector<8x8xf32> to vector<1x8x8xf32>
    %49 = vector.shape_cast %41 : vector<8x8xf32> to vector<1x8x8xf32>
    %50 = vector.shape_cast %42 : vector<8x8xf32> to vector<1x8x8xf32>
    %51 = vector.shape_cast %43 : vector<8x8xf32> to vector<1x8x8xf32>
    %52 = vector.shape_cast %44 : vector<8x8xf32> to vector<1x8x8xf32>
    %53 = vector.shape_cast %45 : vector<8x8xf32> to vector<1x8x8xf32>
    %54 = vector.shape_cast %46 : vector<8x8xf32> to vector<1x8x8xf32>
    %55 = tpu.concatenate %47, %48, %49, %50, %51, %52, %53, %54 in 0 : vector<1x8x8xf32>, vector<1x8x8xf32>, vector<1x8x8xf32>, vector<1x8x8xf32>, vector<1x8x8xf32>, vector<1x8x8xf32>, vector<1x8x8xf32>, vector<1x8x8xf32> -> vector<8x8x8xf32>
    %56 = vector.extract_strided_slice %37 {offsets = [0, 0], sizes = [8, 8], strides = [1, 1]} : vector<16x32xf32> to vector<8x8xf32>
    %57 = vector.extract_strided_slice %37 {offsets = [8, 0], sizes = [8, 8], strides = [1, 1]} : vector<16x32xf32> to vector<8x8xf32>
    %58 = vector.extract_strided_slice %37 {offsets = [0, 8], sizes = [8, 8], strides = [1, 1]} : vector<16x32xf32> to vector<8x8xf32>
    %59 = vector.extract_strided_slice %37 {offsets = [8, 8], sizes = [8, 8], strides = [1, 1]} : vector<16x32xf32> to vector<8x8xf32>
    %60 = vector.extract_strided_slice %37 {offsets = [0, 16], sizes = [8, 8], strides = [1, 1]} : vector<16x32xf32> to vector<8x8xf32>
    %61 = vector.extract_strided_slice %37 {offsets = [8, 16], sizes = [8, 8], strides = [1, 1]} : vector<16x32xf32> to vector<8x8xf32>
    %62 = vector.extract_strided_slice %37 {offsets = [0, 24], sizes = [8, 8], strides = [1, 1]} : vector<16x32xf32> to vector<8x8xf32>
    %63 = vector.extract_strided_slice %37 {offsets = [8, 24], sizes = [8, 8], strides = [1, 1]} : vector<16x32xf32> to vector<8x8xf32>
    %64 = vector.shape_cast %56 : vector<8x8xf32> to vector<1x8x8xf32>
    %65 = vector.shape_cast %57 : vector<8x8xf32> to vector<1x8x8xf32>
    %66 = vector.shape_cast %58 : vector<8x8xf32> to vector<1x8x8xf32>
    %67 = vector.shape_cast %59 : vector<8x8xf32> to vector<1x8x8xf32>
    %68 = vector.shape_cast %60 : vector<8x8xf32> to vector<1x8x8xf32>
    %69 = vector.shape_cast %61 : vector<8x8xf32> to vector<1x8x8xf32>
    %70 = vector.shape_cast %62 : vector<8x8xf32> to vector<1x8x8xf32>
    %71 = vector.shape_cast %63 : vector<8x8xf32> to vector<1x8x8xf32>
    %72 = tpu.concatenate %64, %65, %66, %67, %68, %69, %70, %71 in 0 : vector<1x8x8xf32>, vector<1x8x8xf32>, vector<1x8x8xf32>, vector<1x8x8xf32>, vector<1x8x8xf32>, vector<1x8x8xf32>, vector<1x8x8xf32>, vector<1x8x8xf32> -> vector<8x8x8xf32>
    %73 = vector.extract_strided_slice %38 {offsets = [0, 0], sizes = [8, 8], strides = [1, 1]} : vector<16x32xf32> to vector<8x8xf32>
    %74 = vector.extract_strided_slice %38 {offsets = [8, 0], sizes = [8, 8], strides = [1, 1]} : vector<16x32xf32> to vector<8x8xf32>
    %75 = vector.extract_strided_slice %38 {offsets = [0, 8], sizes = [8, 8], strides = [1, 1]} : vector<16x32xf32> to vector<8x8xf32>
    %76 = vector.extract_strided_slice %38 {offsets = [8, 8], sizes = [8, 8], strides = [1, 1]} : vector<16x32xf32> to vector<8x8xf32>
    %77 = vector.extract_strided_slice %38 {offsets = [0, 16], sizes = [8, 8], strides = [1, 1]} : vector<16x32xf32> to vector<8x8xf32>
    %78 = vector.extract_strided_slice %38 {offsets = [8, 16], sizes = [8, 8], strides = [1, 1]} : vector<16x32xf32> to vector<8x8xf32>
    %79 = vector.extract_strided_slice %38 {offsets = [0, 24], sizes = [8, 8], strides = [1, 1]} : vector<16x32xf32> to vector<8x8xf32>
    %80 = vector.extract_strided_slice %38 {offsets = [8, 24], sizes = [8, 8], strides = [1, 1]} : vector<16x32xf32> to vector<8x8xf32>
    %81 = vector.shape_cast %73 : vector<8x8xf32> to vector<1x8x8xf32>
    %82 = vector.shape_cast %74 : vector<8x8xf32> to vector<1x8x8xf32>
    %83 = vector.shape_cast %75 : vector<8x8xf32> to vector<1x8x8xf32>
    %84 = vector.shape_cast %76 : vector<8x8xf32> to vector<1x8x8xf32>
    %85 = vector.shape_cast %77 : vector<8x8xf32> to vector<1x8x8xf32>
    %86 = vector.shape_cast %78 : vector<8x8xf32> to vector<1x8x8xf32>
    %87 = vector.shape_cast %79 : vector<8x8xf32> to vector<1x8x8xf32>
    %88 = vector.shape_cast %80 : vector<8x8xf32> to vector<1x8x8xf32>
    %89 = tpu.concatenate %81, %82, %83, %84, %85, %86, %87, %88 in 0 : vector<1x8x8xf32>, vector<1x8x8xf32>, vector<1x8x8xf32>, vector<1x8x8xf32>, vector<1x8x8xf32>, vector<1x8x8xf32>, vector<1x8x8xf32>, vector<1x8x8xf32> -> vector<8x8x8xf32>
    %90 = arith.truncf %55 : vector<8x8x8xf32> to vector<8x8x8xbf16>
    %91 = arith.truncf %72 : vector<8x8x8xf32> to vector<8x8x8xbf16>
    %cst_12 = arith.constant dense<0.000000e+00> : vector<8x8x8xf32>
    %92 = tpu.matmul %90, %91, %cst_12 {dimension_numbers = #tpu.dot_dimension_numbers<[2], [2], [1], [1], [0, 0, 0, 1, 1, 1], [0], [0]>} : vector<8x8x8xbf16>, vector<8x8x8xbf16>, vector<8x8x8xf32> -> vector<8x8x8xf32>
    %c0_13 = arith.constant 0 : index
    %c0_14 = arith.constant 0 : index
    %c0_15 = arith.constant 0 : index
    %93 = vector.load %arg1[%c0_13, %c0_14, %c0_15] : memref<8x8x8xf32, #tpu.memory_space<vmem>>, vector<8x8x8xf32>
    %cst_16 = arith.constant 1.000000e+00 : f32
    %94 = vector.broadcast %cst_16 : f32 to vector<8x8x8xf32>
    %95 = arith.subf %94, %93 : vector<8x8x8xf32>
    %96 = arith.mulf %92, %95 : vector<8x8x8xf32>
    %cst_17 = arith.constant 9.99999971E-10 : f32
    %97 = vector.broadcast %cst_17 : f32 to vector<8x8x8xf32>
    %98 = arith.mulf %93, %97 : vector<8x8x8xf32>
    %99 = arith.addf %96, %98 : vector<8x8x8xf32>
    %cst_18 = arith.constant dense<0xFF800000> : vector<8x8xf32>
    %100 = vector.multi_reduction <maximumf>, %99, %cst_18 [2] : vector<8x8x8xf32> to vector<8x8xf32>
    %101 = vector.shape_cast %100 : vector<8x8xf32> to vector<8x8x1xf32>
    %102 = vector.broadcast %101 : vector<8x8x1xf32> to vector<8x8x8xf32>
    %103 = arith.subf %99, %102 : vector<8x8x8xf32>
    %104 = math.exp %103 : vector<8x8x8xf32>
    %cst_19 = arith.constant dense<0.000000e+00> : vector<8x8xf32>
    %105 = vector.multi_reduction <add>, %104, %cst_19 [2] : vector<8x8x8xf32> to vector<8x8xf32>
    %106 = vector.shape_cast %105 : vector<8x8xf32> to vector<8x8x1xf32>
    %107 = vector.broadcast %106 : vector<8x8x1xf32> to vector<8x8x8xf32>
    %108 = arith.divf %104, %107 : vector<8x8x8xf32>
    %109 = arith.truncf %108 : vector<8x8x8xf32> to vector<8x8x8xbf16>
    %110 = arith.truncf %89 : vector<8x8x8xf32> to vector<8x8x8xbf16>
    %cst_20 = arith.constant dense<0.000000e+00> : vector<8x8x8xf32>
    %111 = tpu.matmul %109, %110, %cst_20 {dimension_numbers = #tpu.dot_dimension_numbers<[2], [1], [1], [2], [0, 0, 0, 1, 1, 2], [0], [0]>} : vector<8x8x8xbf16>, vector<8x8x8xbf16>, vector<8x8x8xf32> -> vector<8x8x8xf32>
    %112 = vector.extract_strided_slice %111 {offsets = [0, 0, 0], sizes = [1, 8, 8], strides = [1, 1, 1]} : vector<8x8x8xf32> to vector<1x8x8xf32>
    %113 = vector.shape_cast %112 : vector<1x8x8xf32> to vector<8x8xf32>
    %114 = vector.extract_strided_slice %111 {offsets = [1, 0, 0], sizes = [1, 8, 8], strides = [1, 1, 1]} : vector<8x8x8xf32> to vector<1x8x8xf32>
    %115 = vector.shape_cast %114 : vector<1x8x8xf32> to vector<8x8xf32>
    %116 = tpu.concatenate %113, %115 in 0 : vector<8x8xf32>, vector<8x8xf32> -> vector<16x8xf32>
    %117 = vector.extract_strided_slice %111 {offsets = [2, 0, 0], sizes = [1, 8, 8], strides = [1, 1, 1]} : vector<8x8x8xf32> to vector<1x8x8xf32>
    %118 = vector.shape_cast %117 : vector<1x8x8xf32> to vector<8x8xf32>
    %119 = vector.extract_strided_slice %111 {offsets = [3, 0, 0], sizes = [1, 8, 8], strides = [1, 1, 1]} : vector<8x8x8xf32> to vector<1x8x8xf32>
    %120 = vector.shape_cast %119 : vector<1x8x8xf32> to vector<8x8xf32>
    %121 = tpu.concatenate %118, %120 in 0 : vector<8x8xf32>, vector<8x8xf32> -> vector<16x8xf32>
    %122 = vector.extract_strided_slice %111 {offsets = [4, 0, 0], sizes = [1, 8, 8], strides = [1, 1, 1]} : vector<8x8x8xf32> to vector<1x8x8xf32>
    %123 = vector.shape_cast %122 : vector<1x8x8xf32> to vector<8x8xf32>
    %124 = vector.extract_strided_slice %111 {offsets = [5, 0, 0], sizes = [1, 8, 8], strides = [1, 1, 1]} : vector<8x8x8xf32> to vector<1x8x8xf32>
    %125 = vector.shape_cast %124 : vector<1x8x8xf32> to vector<8x8xf32>
    %126 = tpu.concatenate %123, %125 in 0 : vector<8x8xf32>, vector<8x8xf32> -> vector<16x8xf32>
    %127 = vector.extract_strided_slice %111 {offsets = [6, 0, 0], sizes = [1, 8, 8], strides = [1, 1, 1]} : vector<8x8x8xf32> to vector<1x8x8xf32>
    %128 = vector.shape_cast %127 : vector<1x8x8xf32> to vector<8x8xf32>
    %129 = vector.extract_strided_slice %111 {offsets = [7, 0, 0], sizes = [1, 8, 8], strides = [1, 1, 1]} : vector<8x8x8xf32> to vector<1x8x8xf32>
    %130 = vector.shape_cast %129 : vector<1x8x8xf32> to vector<8x8xf32>
    %131 = tpu.concatenate %128, %130 in 0 : vector<8x8xf32>, vector<8x8xf32> -> vector<16x8xf32>
    %132 = tpu.concatenate %116, %121, %126, %131 in 1 : vector<16x8xf32>, vector<16x8xf32>, vector<16x8xf32>, vector<16x8xf32> -> vector<16x32xf32>
    %133 = arith.truncf %132 : vector<16x32xf32> to vector<16x32xbf16>
    %c0_21 = arith.constant 0 : index
    %c0_22 = arith.constant 0 : index
    %134 = vector.load %arg4[%c0_21, %c0_22] : memref<32x32xbf16, #tpu.memory_space<vmem>>, vector<32x32xbf16>
    %cst_23 = arith.constant dense<0.000000e+00> : vector<16x32xf32>
    %135 = tpu.matmul %133, %134, %cst_23 {dimension_numbers = #tpu.dot_dimension_numbers<[1], [0], [0], [1], [0, 0, 1, 1], [], []>} : vector<16x32xbf16>, vector<32x32xbf16>, vector<16x32xf32> -> vector<16x32xf32>
    %136 = vector.broadcast %2 : vector<1x32xf32> to vector<16x32xf32>
    %137 = arith.addf %135, %136 : vector<16x32xf32>
    %138 = arith.addf %0, %137 : vector<16x32xf32>
    %cst_24 = arith.constant dense<0.000000e+00> : vector<16xf32>
    %139 = vector.multi_reduction <add>, %138, %cst_24 [1] : vector<16x32xf32> to vector<16xf32>
    %140 = vector.shape_cast %139 : vector<16xf32> to vector<16x1xf32>
    %cst_25 = arith.constant 3.200000e+01 : f32
    %141 = vector.broadcast %cst_25 : f32 to vector<16x1xf32>
    %142 = arith.divf %140, %141 : vector<16x1xf32>
    %143 = vector.broadcast %142 : vector<16x1xf32> to vector<16x32xf32>
    %144 = arith.subf %138, %143 : vector<16x32xf32>
    %145 = arith.mulf %144, %144 : vector<16x32xf32>
    %cst_26 = arith.constant dense<0.000000e+00> : vector<16xf32>
    %146 = vector.multi_reduction <add>, %145, %cst_26 [1] : vector<16x32xf32> to vector<16xf32>
    %147 = vector.shape_cast %146 : vector<16xf32> to vector<16x1xf32>
    %cst_27 = arith.constant 3.200000e+01 : f32
    %148 = vector.broadcast %cst_27 : f32 to vector<16x1xf32>
    %149 = arith.divf %147, %148 : vector<16x1xf32>
    %150 = vector.broadcast %142 : vector<16x1xf32> to vector<16x32xf32>
    %151 = arith.subf %138, %150 : vector<16x32xf32>
    %cst_28 = arith.constant 9.99999974E-6 : f32
    %152 = vector.broadcast %cst_28 : f32 to vector<16x1xf32>
    %153 = arith.addf %149, %152 : vector<16x1xf32>
    %154 = math.rsqrt %153 : vector<16x1xf32>
    %155 = vector.broadcast %154 : vector<16x1xf32> to vector<16x32xf32>
    %156 = arith.mulf %151, %155 : vector<16x32xf32>
    %157 = vector.broadcast %5 : vector<1x32xf32> to vector<16x32xf32>
    %158 = arith.mulf %156, %157 : vector<16x32xf32>
    %159 = vector.broadcast %6 : vector<1x32xf32> to vector<16x32xf32>
    %160 = arith.addf %158, %159 : vector<16x32xf32>
    %161 = arith.truncf %160 : vector<16x32xf32> to vector<16x32xbf16>
    %c0_29 = arith.constant 0 : index
    %c0_30 = arith.constant 0 : index
    %162 = vector.load %arg5[%c0_29, %c0_30] : memref<32x64xbf16, #tpu.memory_space<vmem>>, vector<32x64xbf16>
    %cst_31 = arith.constant dense<0.000000e+00> : vector<16x64xf32>
    %163 = tpu.matmul %161, %162, %cst_31 {dimension_numbers = #tpu.dot_dimension_numbers<[1], [0], [0], [1], [0, 0, 1, 1], [], []>} : vector<16x32xbf16>, vector<32x64xbf16>, vector<16x64xf32> -> vector<16x64xf32>
    %c0_32 = arith.constant 0 : index
    %c0_33 = arith.constant 0 : index
    %164 = vector.load %arg6[%c0_32, %c0_33] : memref<1x64xf32, #tpu.memory_space<vmem>>, vector<1x64xf32>
    %165 = vector.broadcast %164 : vector<1x64xf32> to vector<16x64xf32>
    %166 = arith.addf %163, %165 : vector<16x64xf32>
    %cst_34 = arith.constant 0.000000e+00 : f32
    %167 = vector.broadcast %cst_34 : f32 to vector<16x64xf32>
    %168 = arith.maximumf %166, %167 : vector<16x64xf32>
    %169 = arith.truncf %168 : vector<16x64xf32> to vector<16x64xbf16>
    %c0_35 = arith.constant 0 : index
    %c0_36 = arith.constant 0 : index
    %170 = vector.load %arg7[%c0_35, %c0_36] : memref<64x32xbf16, #tpu.memory_space<vmem>>, vector<64x32xbf16>
    %cst_37 = arith.constant dense<0.000000e+00> : vector<16x32xf32>
    %171 = tpu.matmul %169, %170, %cst_37 {dimension_numbers = #tpu.dot_dimension_numbers<[1], [0], [0], [1], [0, 0, 1, 1], [], []>} : vector<16x64xbf16>, vector<64x32xbf16>, vector<16x32xf32> -> vector<16x32xf32>
    %172 = vector.broadcast %7 : vector<1x32xf32> to vector<16x32xf32>
    %173 = arith.addf %171, %172 : vector<16x32xf32>
    %174 = arith.addf %138, %173 : vector<16x32xf32>
    %cst_38 = arith.constant 0.000000e+00 : f32
    %175 = vector.broadcast %cst_38 : f32 to vector<16x96xf32>
    %176 = tpu.concatenate %174, %175 in 1 : vector<16x32xf32>, vector<16x96xf32> -> vector<16x128xf32>
    %c0_39 = arith.constant 0 : index
    %c0_40 = arith.constant 0 : index
    %177 = vector.load %arg9[%c0_39, %c0_40] : memref<16x128xf32, #tpu.memory_space<vmem>>, vector<16x128xf32>
    tpu.vector_store %arg9[%c0_39, %c0_40], %176 {strides = array<i32>} : memref<16x128xf32, #tpu.memory_space<vmem>>, vector<16x128xf32>,
    return
  }
}

</mosaic_0001>

<llo_original>
// kernel: tpu_custom_call.1
$region0: #{tpu_custom_call.1}
  #allocation0 [shape = 'u32[]', space=smem, size = 0x4, offset = 0x4, fixed_abs, tag = 'smem constant byte address 0x4 - core index']
  #allocation1 [shape = 'u32[144,128]{1,0:T(1,128)}', space=vmem, size = 0x12000, scoped, tag = 'internal scratch']
  %s0 = inlined_call_operand.vmem [shape: f32[16,32], index: 0, kind: input, shape index: {}]
  %s1 = inlined_call_operand.hbm [shape: f32[8,8,8], index: 1, kind: input, shape index: {}]
  %s2 = inlined_call_operand.vmem [shape: bf16[32,96], index: 2, kind: input, shape index: {}]
  %s3 = inlined_call_operand.vmem [shape: f32[1,96], index: 3, kind: input, shape index: {}]
  %s4 = inlined_call_operand.vmem [shape: bf16[32,32], index: 4, kind: input, shape index: {}]
  %s5 = inlined_call_operand.hbm [shape: bf16[32,64], index: 5, kind: input, shape index: {}]
  %s6 = inlined_call_operand.vmem [shape: f32[1,64], index: 6, kind: input, shape index: {}]
  %s7 = inlined_call_operand.vmem [shape: bf16[64,32], index: 7, kind: input, shape index: {}]
  %s8 = inlined_call_operand.vmem [shape: f32[6,32], index: 8, kind: input, shape index: {}]
  %s9 = inlined_call_operand.hbm [shape: f32[16,128], index: 9, kind: output, shape index: {}]
  %s10 = sld [smem:[#allocation0]]
  $region54: #{tpu_custom_call.1} parent=0
    _
  %s12 = ssub.s32 1, %s10
  %s13 = scalar_select 0, %s12, %s10
  $region1: #{tpu_custom_call.1} parent=0
    #allocation2 [shape = 'u8[32768]{0}', space=vmem, size = 0x8000, scoped, tag = 'input window, operand 1, single buffered']
    #allocation3 [shape = 's32[1]{0}', space=sflag, size = 0x4, scoped, tag = 'scoped memory for tpu_custom_call.1']
    #allocation4 [shape = 's32[1]{0}', space=sflag, size = 0x4, scoped, tag = 'scoped memory for tpu_custom_call.1']
    #allocation5 [shape = 'u8[8192]{0}', space=vmem, size = 0x2000, scoped, tag = 'input window, operand 5, single buffered']
    #allocation6 [shape = 's32[1]{0}', space=sflag, size = 0x4, scoped, tag = 'scoped memory for tpu_custom_call.1']
    #allocation7 [shape = 'u8[8192]{0}', space=vmem, size = 0x2000, scoped, tag = 'output window, operand 0, single buffered']
    %14 = vsyncpa [#allocation3], 0
    %15 = vsyncpa [#allocation6], 0
    %16 = vsyncpa [#allocation4], 0
    // Predicated region
    $region2: #{tpu_custom_call.1} parent=1 // pred_check
      _
    $region3: #{tpu_custom_call.1} parent=1 // pred_check_branch
      %18 = sbr.rel (0) target = $region5
    $region4: #{tpu_custom_call.1} parent=1 // pred_region
      _
    $region5: #{tpu_custom_call.1} parent=1 // pred_fallthru
      _
    // Predicated region
    $region6: #{tpu_custom_call.1} parent=1 // pred_check
      _
    $region7: #{tpu_custom_call.1} parent=1 // pred_check_branch
      %20 = sbr.rel (0) target = $region9
    $region8: #{tpu_custom_call.1} parent=1 // pred_region
      %s22 = ssub.s32 1024, 1024
      %23 = vsyncadd [#allocation3], %s22
      %s24 = sshll.u32 [#allocation2], 4
      %s25 = int_to_ptr.vmem [resolvable:$true] %s24
      %30 = dma.hbm_to_vmem [thread:$0]  %s1, 1024, %s25, [#allocation3], 128, 128, 8
    $region9: #{tpu_custom_call.1} parent=1 // pred_fallthru
      _
    // Predicated region
    $region10: #{tpu_custom_call.1} parent=1 // pred_check
      _
    $region11: #{tpu_custom_call.1} parent=1 // pred_check_branch
      %32 = sbr.rel (0) target = $region13
    $region12: #{tpu_custom_call.1} parent=1 // pred_region
      _
    $region13: #{tpu_custom_call.1} parent=1 // pred_fallthru
      _
    // Predicated region
    $region14: #{tpu_custom_call.1} parent=1 // pred_check
      _
    $region15: #{tpu_custom_call.1} parent=1 // pred_check_branch
      %34 = sbr.rel (0) target = $region17
    $region16: #{tpu_custom_call.1} parent=1 // pred_region
      _
    $region17: #{tpu_custom_call.1} parent=1 // pred_fallthru
      _
    // Predicated region
    $region18: #{tpu_custom_call.1} parent=1 // pred_check
      _
    $region19: #{tpu_custom_call.1} parent=1 // pred_check_branch
      %36 = sbr.rel (0) target = $region21
    $region20: #{tpu_custom_call.1} parent=1 // pred_region
      _
    $region21: #{tpu_custom_call.1} parent=1 // pred_fallthru
      _
    // Predicated region
    $region22: #{tpu_custom_call.1} parent=1 // pred_check
      _
    $region23: #{tpu_custom_call.1} parent=1 // pred_check_branch
      %38 = sbr.rel (0) target = $region25
    $region24: #{tpu_custom_call.1} parent=1 // pred_region
      %s40 = ssub.s32 256, 256
      %41 = vsyncadd [#allocation6], %s40
      %s42 = sshll.u32 [#allocation5], 4
      %s43 = int_to_ptr.vmem [resolvable:$true] %s42
      %48 = dma.hbm_to_vmem [thread:$0]  %s5, 256, %s43, [#allocation6], 64, 64, 4
    $region25: #{tpu_custom_call.1} parent=1 // pred_fallthru
      _
    // Predicated region
    $region26: #{tpu_custom_call.1} parent=1 // pred_check
      _
    $region27: #{tpu_custom_call.1} parent=1 // pred_check_branch
      %50 = sbr.rel (0) target = $region29
    $region28: #{tpu_custom_call.1} parent=1 // pred_region
      _
    $region29: #{tpu_custom_call.1} parent=1 // pred_fallthru
      _
    // Predicated region
    $region30: #{tpu_custom_call.1} parent=1 // pred_check
      _
    $region31: #{tpu_custom_call.1} parent=1 // pred_check_branch
      %52 = sbr.rel (0) target = $region33
    $region32: #{tpu_custom_call.1} parent=1 // pred_region
      _
    $region33: #{tpu_custom_call.1} parent=1 // pred_fallthru
      _
    // Predicated region
    $region34: #{tpu_custom_call.1} parent=1 // pred_check
      _
    $region35: #{tpu_custom_call.1} parent=1 // pred_check_branch
      %54 = sbr.rel (0) target = $region37
    $region36: #{tpu_custom_call.1} parent=1 // pred_region
      _
    $region37: #{tpu_custom_call.1} parent=1 // pred_fallthru
      _
    // Predicated region
    $region38: #{tpu_custom_call.1} parent=1 // pred_check
      _
    $region39: #{tpu_custom_call.1} parent=1 // pred_check_branch
      %56 = sbr.rel (0) target = $region41
    $region40: #{tpu_custom_call.1} parent=1 // pred_region
      %57 = dma.done [#allocation3], 1024
    $region41: #{tpu_custom_call.1} parent=1 // pred_fallthru
      _
    // Predicated region
    $region42: #{tpu_custom_call.1} parent=1 // pred_check
      _
    $region43: #{tpu_custom_call.1} parent=1 // pred_check_branch
      %59 = sbr.rel (0) target = $region45
    $region44: #{tpu_custom_call.1} parent=1 // pred_region
      %60 = dma.done [#allocation6], 256
    $region45: #{tpu_custom_call.1} parent=1 // pred_fallthru
      _
    %v62 = vld [vmem:[%s0] sm:$0xff]
    %v63 = vld [vmem:[%s0 + $0x8] sm:$0xff]
    %v64 = vld [vmem:[%s8] sm:$0x3f]
    %vm65 = vcmask 261120
    %v66 = vsel %vm65, %v62, 0.0
    %67 = vadd.xlane.f32.xlu0 %v66
    %v68 = vpop.xlane.xlu0 %67
    %v69 = vsel %vm65, %v63, 0.0
    %70 = vadd.xlane.f32.xlu0 %v69
    %v71 = vpop.xlane.xlu0 %70
    %v72 = vrcp.pop 32.0
    %v73 = vmul.f32 %v68, %v72
    %v74 = vmul.f32 %v71, %v72
    %v75 = vsub.f32 %v62, %v73
    %v76 = vsub.f32 %v63, %v74
    %v77 = vmul.f32 %v75, %v75
    %v78 = vmul.f32 %v76, %v76
    %v79 = vsel %vm65, %v77, 0.0
    %80 = vadd.xlane.f32.xlu0 %v79
    %v81 = vpop.xlane.xlu0 %80
    %v82 = vsel %vm65, %v78, 0.0
    %83 = vadd.xlane.f32.xlu0 %v82
    %v84 = vpop.xlane.xlu0 %83
    %v85 = vmul.f32 %v81, %v72
    %v86 = vmul.f32 %v84, %v72
    %v87 = vadd.f32 %v85, 1e-05
    %v88 = vadd.f32 %v86, 1e-05
    %v89 = vrsqrt.pop %v87
    %v90 = vrsqrt.pop %v88
    %v91 = vmul.f32 %v75, %v89
    %v92 = vmul.f32 %v76, %v90
    %v93 = vlaneseq
    %v94 = vshrl.u32 %v93, 7
    %v95 = vsub.s32 1, %v94
    %v96 = vrot.slane %v64, %v95
    %v97 = vmul.f32 %v91, %v96
    %v98 = vmul.f32 %v92, %v96
    %v99 = vlaneseq
    %v100 = vshrl.u32 %v99, 7
    %v101 = vsub.s32 2, %v100
    %v102 = vrot.slane %v64, %v101
    %v103 = vadd.f32 %v97, %v102
    %v104 = vadd.f32 %v98, %v102
    %v105 = vpack.c.bf16 %v104, %v103
    %v106 = vld [vmem:[%s2] sm:$0xf]
    %v107 = vld [vmem:[%s2 + $0x4] sm:$0xf]
    %v108 = vld [vmem:[%s2 + $0x8] sm:$0xf]
    %v109 = vld [vmem:[%s2 + $0xc] sm:$0xf]
    %v110 = vld [vmem:[%s3] sm:$0x1]
    %v112 = vlaneseq
    %v113 = vshrl.u32 %v112, 7
    %v114 = vsub.s32 0, %v113
    %v115 = vrot.slane %v110, %v114
    %v121 = vunpack.c.l.b16 %v106
    %v122 = vunpack.c.l.b16 %v107
    %v123 = vunpack.c.l.b16 %v108
    %v124 = vunpack.c.l.b16 %v109
    %v125 = vpack.c.b16 %v122, %v121
    %v126 = vpack.c.b16 %v124, %v123
    %v130 = vsel %vm65, %v105, 0
    %132 = vmatprep.subr.bf16.mxu0 0
    %133 = vmatpush1.bf16.msra.mxu0 %v125
    %134 = vmatprep.subr.bf16.mxu0 0
    %135 = vmatpush1.bf16.msra.mxu0 %v126
    %136 = vmatprep.subr.bf16.mxu0 0
    %137 = vmatpush1.bf16.msra.mxu0 0
    %138 = vmatprep.subr.bf16.mxu0 0
    %139 = vmatpush1.bf16.msra.mxu0 0
    %140 = vmatprep.subr.bf16.mxu0 0
    %141 = vmatpush1.bf16.msra.mxu0 0
    %142 = vmatprep.subr.bf16.mxu0 0
    %143 = vmatpush1.bf16.msra.mxu0 0
    %144 = vmatprep.subr.bf16.mxu0 0
    %145 = vmatpush1.bf16.msra.mxu0 0
    %146 = vmatprep.subr.bf16.mxu0 0
    %147 = vmatpush1.bf16.msra.mxu0 0
    %148 = vmatprep.subr.bf16.mxu0 0
    %149 = vmatpush1.bf16.msra.mxu0 0
    %150 = vmatprep.subr.bf16.mxu0 0
    %151 = vmatpush1.bf16.msra.mxu0 0
    %152 = vmatprep.subr.bf16.mxu0 0
    %153 = vmatpush1.bf16.msra.mxu0 0
    %154 = vmatprep.subr.bf16.mxu0 0
    %155 = vmatpush1.bf16.msra.mxu0 0
    %156 = vmatprep.subr.bf16.mxu0 0
    %157 = vmatpush1.bf16.msra.mxu0 0
    %158 = vmatprep.subr.bf16.mxu0 0
    %159 = vmatpush1.bf16.msra.mxu0 0
    %160 = vmatprep.subr.bf16.mxu0 0
    %161 = vmatpush1.bf16.msra.mxu0 0
    %162 = vmatprep.subr.bf16.mxu0 0
    %163 = vmatpush1.bf16.msra.mxu0 0
    %164 = vmatprep.mubr.bf16.mxu0 0
    %165 = vmatmul.mubr.bf16.gmra.mrb[0].mxu0 %v130
    %v166 = vpop.f32.mrb[0].mxu0
    %v167 = vadd.f32 %v115, %v166
    %v168 = vpop.f32.mrb[0].mxu0
    %v169 = vpop.f32.mrb[0].mxu0
    %v170 = vadd.f32 %v115, %v169
    %v171 = vpop.f32.mrb[0].mxu0
    %172 = vdwg.mxu0
    %174 = vrot.lane.b32.xlu0 %v167, 120
    %v175 = vpop.permute.xlu0 %174
    %178 = vrot.lane.b32.xlu0 %v170, 120
    %v179 = vpop.permute.xlu0 %178
    %181 = vrot.lane.b32.xlu0 %v167, 112
    %v182 = vpop.permute.xlu0 %181
    %184 = vrot.lane.b32.xlu0 %v170, 112
    %v185 = vpop.permute.xlu0 %184
    %187 = vrot.lane.b32.xlu0 %v167, 104
    %v188 = vpop.permute.xlu0 %187
    %190 = vrot.lane.b32.xlu0 %v170, 104
    %v191 = vpop.permute.xlu0 %190
    %v193 = vpack.c.bf16 %v167, %v167
    %v194 = vpack.c.bf16 %v170, %v170
    %v195 = vpack.c.bf16 %v175, %v175
    %v196 = vpack.c.bf16 %v179, %v179
    %v197 = vpack.c.bf16 %v182, %v182
    %v198 = vpack.c.bf16 %v185, %v185
    %v199 = vpack.c.bf16 %v188, %v188
    %v200 = vpack.c.bf16 %v191, %v191
    %202 = vrot.lane.b32.xlu0 %v193, 96
    %v203 = vpop.permute.xlu0 %202
    %vm204 = vcmask 64512
    %v206 = vsel %vm204, %v193, 0
    %v209 = vsel %vm204, %v203, 0
    %211 = vmatprep.subr.bf16.mxu0 0
    %212 = vmatpush1.bf16.xpose.msra.mxu0 %v209
    %213 = vmatprep.subr.bf16.mxu0 0
    %214 = vmatpush1.bf16.xpose.msra.mxu0 0
    %215 = vmatprep.subr.bf16.mxu0 0
    %216 = vmatpush1.bf16.xpose.msra.mxu0 0
    %217 = vmatprep.subr.bf16.mxu0 0
    %218 = vmatpush1.bf16.xpose.msra.mxu0 0
    %219 = vmatprep.subr.bf16.mxu0 0
    %220 = vmatpush1.bf16.xpose.msra.mxu0 0
    %221 = vmatprep.subr.bf16.mxu0 0
    %222 = vmatpush1.bf16.xpose.msra.mxu0 0
    %223 = vmatprep.subr.bf16.mxu0 0
    %224 = vmatpush1.bf16.xpose.msra.mxu0 0
    %225 = vmatprep.subr.bf16.mxu0 0
    %226 = vmatpush1.bf16.xpose.msra.mxu0 0
    %227 = vmatprep.subr.bf16.mxu0 0
    %228 = vmatpush1.bf16.xpose.msra.mxu0 0
    %229 = vmatprep.subr.bf16.mxu0 0
    %230 = vmatpush1.bf16.xpose.msra.mxu0 0
    %231 = vmatprep.subr.bf16.mxu0 0
    %232 = vmatpush1.bf16.xpose.msra.mxu0 0
    %233 = vmatprep.subr.bf16.mxu0 0
    %234 = vmatpush1.bf16.xpose.msra.mxu0 0
    %235 = vmatprep.subr.bf16.mxu0 0
    %236 = vmatpush1.bf16.xpose.msra.mxu0 0
    %237 = vmatprep.subr.bf16.mxu0 0
    %238 = vmatpush1.bf16.xpose.msra.mxu0 0
    %239 = vmatprep.subr.bf16.mxu0 0
    %240 = vmatpush1.bf16.xpose.msra.mxu0 0
    %241 = vmatprep.subr.bf16.mxu0 0
    %242 = vmatpush1.bf16.xpose.msra.mxu0 0
    %243 = vmatprep.mubr.bf16.mxu0 0
    %244 = vmatmul.mubr.bf16.gmra.mrb[0].mxu0 %v206
    %v245 = vpop.f32.mrb[0].mxu0
    %v246 = vadd.f32 0.0, %v245
    %v247 = vpop.f32.mrb[0].mxu0
    %v248 = vpop.f32.mrb[0].mxu0
    %v249 = vpop.f32.mrb[0].mxu0
    %250 = vdwg.mxu0
    %252 = vrot.lane.b32.xlu0 %v194, 96
    %v253 = vpop.permute.xlu0 %252
    %v255 = vsel %vm204, %v194, 0
    %v258 = vsel %vm204, %v253, 0
    %260 = vmatprep.subr.bf16.mxu0 0
    %261 = vmatpush1.bf16.xpose.msra.mxu0 %v258
    %262 = vmatprep.subr.bf16.mxu0 0
    %263 = vmatpush1.bf16.xpose.msra.mxu0 0
    %264 = vmatprep.subr.bf16.mxu0 0
    %265 = vmatpush1.bf16.xpose.msra.mxu0 0
    %266 = vmatprep.subr.bf16.mxu0 0
    %267 = vmatpush1.bf16.xpose.msra.mxu0 0
    %268 = vmatprep.subr.bf16.mxu0 0
    %269 = vmatpush1.bf16.xpose.msra.mxu0 0
    %270 = vmatprep.subr.bf16.mxu0 0
    %271 = vmatpush1.bf16.xpose.msra.mxu0 0
    %272 = vmatprep.subr.bf16.mxu0 0
    %273 = vmatpush1.bf16.xpose.msra.mxu0 0
    %274 = vmatprep.subr.bf16.mxu0 0
    %275 = vmatpush1.bf16.xpose.msra.mxu0 0
    %276 = vmatprep.subr.bf16.mxu0 0
    %277 = vmatpush1.bf16.xpose.msra.mxu0 0
    %278 = vmatprep.subr.bf16.mxu0 0
    %279 = vmatpush1.bf16.xpose.msra.mxu0 0
    %280 = vmatprep.subr.bf16.mxu0 0
    %281 = vmatpush1.bf16.xpose.msra.mxu0 0
    %282 = vmatprep.subr.bf16.mxu0 0
    %283 = vmatpush1.bf16.xpose.msra.mxu0 0
    %284 = vmatprep.subr.bf16.mxu0 0
    %285 = vmatpush1.bf16.xpose.msra.mxu0 0
    %286 = vmatprep.subr.bf16.mxu0 0
    %287 = vmatpush1.bf16.xpose.msra.mxu0 0
    %288 = vmatprep.subr.bf16.mxu0 0
    %289 = vmatpush1.bf16.xpose.msra.mxu0 0
    %290 = vmatprep.subr.bf16.mxu0 0
    %291 = vmatpush1.bf16.xpose.msra.mxu0 0
    %292 = vmatprep.mubr.bf16.mxu0 0
    %293 = vmatmul.mubr.bf16.gmra.mrb[0].mxu0 %v255
    %v294 = vpop.f32.mrb[0].mxu0
    %v295 = vadd.f32 0.0, %v294
    %v296 = vpop.f32.mrb[0].mxu0
    %v297 = vpop.f32.mrb[0].mxu0
    %v298 = vpop.f32.mrb[0].mxu0
    %299 = vdwg.mxu0
    %301 = vrot.lane.b32.xlu0 %v195, 96
    %v302 = vpop.permute.xlu0 %301
    %v304 = vsel %vm204, %v195, 0
    %v307 = vsel %vm204, %v302, 0
    %309 = vmatprep.subr.bf16.mxu0 0
    %310 = vmatpush1.bf16.xpose.msra.mxu0 %v307
    %311 = vmatprep.subr.bf16.mxu0 0
    %312 = vmatpush1.bf16.xpose.msra.mxu0 0
    %313 = vmatprep.subr.bf16.mxu0 0
    %314 = vmatpush1.bf16.xpose.msra.mxu0 0
    %315 = vmatprep.subr.bf16.mxu0 0
    %316 = vmatpush1.bf16.xpose.msra.mxu0 0
    %317 = vmatprep.subr.bf16.mxu0 0
    %318 = vmatpush1.bf16.xpose.msra.mxu0 0
    %319 = vmatprep.subr.bf16.mxu0 0
    %320 = vmatpush1.bf16.xpose.msra.mxu0 0
    %321 = vmatprep.subr.bf16.mxu0 0
    %322 = vmatpush1.bf16.xpose.msra.mxu0 0
    %323 = vmatprep.subr.bf16.mxu0 0
    %324 = vmatpush1.bf16.xpose.msra.mxu0 0
    %325 = vmatprep.subr.bf16.mxu0 0
    %326 = vmatpush1.bf16.xpose.msra.mxu0 0
    %327 = vmatprep.subr.bf16.mxu0 0
    %328 = vmatpush1.bf16.xpose.msra.mxu0 0
    %329 = vmatprep.subr.bf16.mxu0 0
    %330 = vmatpush1.bf16.xpose.msra.mxu0 0
    %331 = vmatprep.subr.bf16.mxu0 0
    %332 = vmatpush1.bf16.xpose.msra.mxu0 0
    %333 = vmatprep.subr.bf16.mxu0 0
    %334 = vmatpush1.bf16.xpose.msra.mxu0 0
    %335 = vmatprep.subr.bf16.mxu0 0
    %336 = vmatpush1.bf16.xpose.msra.mxu0 0
    %337 = vmatprep.subr.bf16.mxu0 0
    %338 = vmatpush1.bf16.xpose.msra.mxu0 0
    %339 = vmatprep.subr.bf16.mxu0 0
    %340 = vmatpush1.bf16.xpose.msra.mxu0 0
    %341 = vmatprep.mubr.bf16.mxu0 0
    %342 = vmatmul.mubr.bf16.gmra.mrb[0].mxu0 %v304
    %v343 = vpop.f32.mrb[0].mxu0
    %v344 = vadd.f32 0.0, %v343
    %v345 = vpop.f32.mrb[0].mxu0
    %v346 = vpop.f32.mrb[0].mxu0
    %v347 = vpop.f32.mrb[0].mxu0
    %348 = vdwg.mxu0
    %350 = vrot.lane.b32.xlu0 %v196, 96
    %v351 = vpop.permute.xlu0 %350
    %v353 = vsel %vm204, %v196, 0
    %v356 = vsel %vm204, %v351, 0
    %358 = vmatprep.subr.bf16.mxu0 0
    %359 = vmatpush1.bf16.xpose.msra.mxu0 %v356
    %360 = vmatprep.subr.bf16.mxu0 0
    %361 = vmatpush1.bf16.xpose.msra.mxu0 0
    %362 = vmatprep.subr.bf16.mxu0 0
    %363 = vmatpush1.bf16.xpose.msra.mxu0 0
    %364 = vmatprep.subr.bf16.mxu0 0
    %365 = vmatpush1.bf16.xpose.msra.mxu0 0
    %366 = vmatprep.subr.bf16.mxu0 0
    %367 = vmatpush1.bf16.xpose.msra.mxu0 0
    %368 = vmatprep.subr.bf16.mxu0 0
    %369 = vmatpush1.bf16.xpose.msra.mxu0 0
    %370 = vmatprep.subr.bf16.mxu0 0
    %371 = vmatpush1.bf16.xpose.msra.mxu0 0
    %372 = vmatprep.subr.bf16.mxu0 0
    %373 = vmatpush1.bf16.xpose.msra.mxu0 0
    %374 = vmatprep.subr.bf16.mxu0 0
    %375 = vmatpush1.bf16.xpose.msra.mxu0 0
    %376 = vmatprep.subr.bf16.mxu0 0
    %377 = vmatpush1.bf16.xpose.msra.mxu0 0
    %378 = vmatprep.subr.bf16.mxu0 0
    %379 = vmatpush1.bf16.xpose.msra.mxu0 0
    %380 = vmatprep.subr.bf16.mxu0 0
    %381 = vmatpush1.bf16.xpose.msra.mxu0 0
    %382 = vmatprep.subr.bf16.mxu0 0
    %383 = vmatpush1.bf16.xpose.msra.mxu0 0
    %384 = vmatprep.subr.bf16.mxu0 0
    %385 = vmatpush1.bf16.xpose.msra.mxu0 0
    %386 = vmatprep.subr.bf16.mxu0 0
    %387 = vmatpush1.bf16.xpose.msra.mxu0 0
    %388 = vmatprep.subr.bf16.mxu0 0
    %389 = vmatpush1.bf16.xpose.msra.mxu0 0
    %390 = vmatprep.mubr.bf16.mxu0 0
    %391 = vmatmul.mubr.bf16.gmra.mrb[0].mxu0 %v353
    %v392 = vpop.f32.mrb[0].mxu0
    %v393 = vadd.f32 0.0, %v392
    %v394 = vpop.f32.mrb[0].mxu0
    %v395 = vpop.f32.mrb[0].mxu0
    %v396 = vpop.f32.mrb[0].mxu0
    %397 = vdwg.mxu0
    %399 = vrot.lane.b32.xlu0 %v197, 96
    %v400 = vpop.permute.xlu0 %399
    %v402 = vsel %vm204, %v197, 0
    %v405 = vsel %vm204, %v400, 0
    %407 = vmatprep.subr.bf16.mxu0 0
    %408 = vmatpush1.bf16.xpose.msra.mxu0 %v405
    %409 = vmatprep.subr.bf16.mxu0 0
    %410 = vmatpush1.bf16.xpose.msra.mxu0 0
    %411 = vmatprep.subr.bf16.mxu0 0
    %412 = vmatpush1.bf16.xpose.msra.mxu0 0
    %413 = vmatprep.subr.bf16.mxu0 0
    %414 = vmatpush1.bf16.xpose.msra.mxu0 0
    %415 = vmatprep.subr.bf16.mxu0 0
    %416 = vmatpush1.bf16.xpose.msra.mxu0 0
    %417 = vmatprep.subr.bf16.mxu0 0
    %418 = vmatpush1.bf16.xpose.msra.mxu0 0
    %419 = vmatprep.subr.bf16.mxu0 0
    %420 = vmatpush1.bf16.xpose.msra.mxu0 0
    %421 = vmatprep.subr.bf16.mxu0 0
    %422 = vmatpush1.bf16.xpose.msra.mxu0 0
    %423 = vmatprep.subr.bf16.mxu0 0
    %424 = vmatpush1.bf16.xpose.msra.mxu0 0
    %425 = vmatprep.subr.bf16.mxu0 0
    %426 = vmatpush1.bf16.xpose.msra.mxu0 0
    %427 = vmatprep.subr.bf16.mxu0 0
    %428 = vmatpush1.bf16.xpose.msra.mxu0 0
    %429 = vmatprep.subr.bf16.mxu0 0
    %430 = vmatpush1.bf16.xpose.msra.mxu0 0
    %431 = vmatprep.subr.bf16.mxu0 0
    %432 = vmatpush1.bf16.xpose.msra.mxu0 0
    %433 = vmatprep.subr.bf16.mxu0 0
    %434 = vmatpush1.bf16.xpose.msra.mxu0 0
    %435 = vmatprep.subr.bf16.mxu0 0
    %436 = vmatpush1.bf16.xpose.msra.mxu0 0
    %437 = vmatprep.subr.bf16.mxu0 0
    %438 = vmatpush1.bf16.xpose.msra.mxu0 0
    %439 = vmatprep.mubr.bf16.mxu0 0
    %440 = vmatmul.mubr.bf16.gmra.mrb[0].mxu0 %v402
    %v441 = vpop.f32.mrb[0].mxu0
    %v442 = vadd.f32 0.0, %v441
    %v443 = vpop.f32.mrb[0].mxu0
    %v444 = vpop.f32.mrb[0].mxu0
    %v445 = vpop.f32.mrb[0].mxu0
    %446 = vdwg.mxu0
    %448 = vrot.lane.b32.xlu0 %v198, 96
    %v449 = vpop.permute.xlu0 %448
    %v451 = vsel %vm204, %v198, 0
    %v454 = vsel %vm204, %v449, 0
    %456 = vmatprep.subr.bf16.mxu0 0
    %457 = vmatpush1.bf16.xpose.msra.mxu0 %v454
    %458 = vmatprep.subr.bf16.mxu0 0
    %459 = vmatpush1.bf16.xpose.msra.mxu0 0
    %460 = vmatprep.subr.bf16.mxu0 0
    %461 = vmatpush1.bf16.xpose.msra.mxu0 0
    %462 = vmatprep.subr.bf16.mxu0 0
    %463 = vmatpush1.bf16.xpose.msra.mxu0 0
    %464 = vmatprep.subr.bf16.mxu0 0
    %465 = vmatpush1.bf16.xpose.msra.mxu0 0
    %466 = vmatprep.subr.bf16.mxu0 0
    %467 = vmatpush1.bf16.xpose.msra.mxu0 0
    %468 = vmatprep.subr.bf16.mxu0 0
    %469 = vmatpush1.bf16.xpose.msra.mxu0 0
    %470 = vmatprep.subr.bf16.mxu0 0
    %471 = vmatpush1.bf16.xpose.msra.mxu0 0
    %472 = vmatprep.subr.bf16.mxu0 0
    %473 = vmatpush1.bf16.xpose.msra.mxu0 0
    %474 = vmatprep.subr.bf16.mxu0 0
    %475 = vmatpush1.bf16.xpose.msra.mxu0 0
    %476 = vmatprep.subr.bf16.mxu0 0
    %477 = vmatpush1.bf16.xpose.msra.mxu0 0
    %478 = vmatprep.subr.bf16.mxu0 0
    %479 = vmatpush1.bf16.xpose.msra.mxu0 0
    %480 = vmatprep.subr.bf16.mxu0 0
    %481 = vmatpush1.bf16.xpose.msra.mxu0 0
    %482 = vmatprep.subr.bf16.mxu0 0
    %483 = vmatpush1.bf16.xpose.msra.mxu0 0
    %484 = vmatprep.subr.bf16.mxu0 0
    %485 = vmatpush1.bf16.xpose.msra.mxu0 0
    %486 = vmatprep.subr.bf16.mxu0 0
    %487 = vmatpush1.bf16.xpose.msra.mxu0 0
    %488 = vmatprep.mubr.bf16.mxu0 0
    %489 = vmatmul.mubr.bf16.gmra.mrb[0].mxu0 %v451
    %v490 = vpop.f32.mrb[0].mxu0
    %v491 = vadd.f32 0.0, %v490
    %v492 = vpop.f32.mrb[0].mxu0
    %v493 = vpop.f32.mrb[0].mxu0
    %v494 = vpop.f32.mrb[0].mxu0
    %495 = vdwg.mxu0
    %497 = vrot.lane.b32.xlu0 %v199, 96
    %v498 = vpop.permute.xlu0 %497
    %v500 = vsel %vm204, %v199, 0
    %v503 = vsel %vm204, %v498, 0
    %505 = vmatprep.subr.bf16.mxu0 0
    %506 = vmatpush1.bf16.xpose.msra.mxu0 %v503
    %507 = vmatprep.subr.bf16.mxu0 0
    %508 = vmatpush1.bf16.xpose.msra.mxu0 0
    %509 = vmatprep.subr.bf16.mxu0 0
    %510 = vmatpush1.bf16.xpose.msra.mxu0 0
    %511 = vmatprep.subr.bf16.mxu0 0
    %512 = vmatpush1.bf16.xpose.msra.mxu0 0
    %513 = vmatprep.subr.bf16.mxu0 0
    %514 = vmatpush1.bf16.xpose.msra.mxu0 0
    %515 = vmatprep.subr.bf16.mxu0 0
    %516 = vmatpush1.bf16.xpose.msra.mxu0 0
    %517 = vmatprep.subr.bf16.mxu0 0
    %518 = vmatpush1.bf16.xpose.msra.mxu0 0
    %519 = vmatprep.subr.bf16.mxu0 0
    %520 = vmatpush1.bf16.xpose.msra.mxu0 0
    %521 = vmatprep.subr.bf16.mxu0 0
    %522 = vmatpush1.bf16.xpose.msra.mxu0 0
    %523 = vmatprep.subr.bf16.mxu0 0
    %524 = vmatpush1.bf16.xpose.msra.mxu0 0
    %525 = vmatprep.subr.bf16.mxu0 0
    %526 = vmatpush1.bf16.xpose.msra.mxu0 0
    %527 = vmatprep.subr.bf16.mxu0 0
    %528 = vmatpush1.bf16.xpose.msra.mxu0 0
    %529 = vmatprep.subr.bf16.mxu0 0
    %530 = vmatpush1.bf16.xpose.msra.mxu0 0
    %531 = vmatprep.subr.bf16.mxu0 0
    %532 = vmatpush1.bf16.xpose.msra.mxu0 0
    %533 = vmatprep.subr.bf16.mxu0 0
    %534 = vmatpush1.bf16.xpose.msra.mxu0 0
    %535 = vmatprep.subr.bf16.mxu0 0
    %536 = vmatpush1.bf16.xpose.msra.mxu0 0
    %537 = vmatprep.mubr.bf16.mxu0 0
    %538 = vmatmul.mubr.bf16.gmra.mrb[0].mxu0 %v500
    %v539 = vpop.f32.mrb[0].mxu0
    %v540 = vadd.f32 0.0, %v539
    %v541 = vpop.f32.mrb[0].mxu0
    %v542 = vpop.f32.mrb[0].mxu0
    %v543 = vpop.f32.mrb[0].mxu0
    %544 = vdwg.mxu0
    %546 = vrot.lane.b32.xlu0 %v200, 96
    %v547 = vpop.permute.xlu0 %546
    %v549 = vsel %vm204, %v200, 0
    %v552 = vsel %vm204, %v547, 0
    %554 = vmatprep.subr.bf16.mxu0 0
    %555 = vmatpush1.bf16.xpose.msra.mxu0 %v552
    %556 = vmatprep.subr.bf16.mxu0 0
    %557 = vmatpush1.bf16.xpose.msra.mxu0 0
    %558 = vmatprep.subr.bf16.mxu0 0
    %559 = vmatpush1.bf16.xpose.msra.mxu0 0
    %560 = vmatprep.subr.bf16.mxu0 0
    %561 = vmatpush1.bf16.xpose.msra.mxu0 0
    %562 = vmatprep.subr.bf16.mxu0 0
    %563 = vmatpush1.bf16.xpose.msra.mxu0 0
    %564 = vmatprep.subr.bf16.mxu0 0
    %565 = vmatpush1.bf16.xpose.msra.mxu0 0
    %566 = vmatprep.subr.bf16.mxu0 0
    %567 = vmatpush1.bf16.xpose.msra.mxu0 0
    %568 = vmatprep.subr.bf16.mxu0 0
    %569 = vmatpush1.bf16.xpose.msra.mxu0 0
    %570 = vmatprep.subr.bf16.mxu0 0
    %571 = vmatpush1.bf16.xpose.msra.mxu0 0
    %572 = vmatprep.subr.bf16.mxu0 0
    %573 = vmatpush1.bf16.xpose.msra.mxu0 0
    %574 = vmatprep.subr.bf16.mxu0 0
    %575 = vmatpush1.bf16.xpose.msra.mxu0 0
    %576 = vmatprep.subr.bf16.mxu0 0
    %577 = vmatpush1.bf16.xpose.msra.mxu0 0
    %578 = vmatprep.subr.bf16.mxu0 0
    %579 = vmatpush1.bf16.xpose.msra.mxu0 0
    %580 = vmatprep.subr.bf16.mxu0 0
    %581 = vmatpush1.bf16.xpose.msra.mxu0 0
    %582 = vmatprep.subr.bf16.mxu0 0
    %583 = vmatpush1.bf16.xpose.msra.mxu0 0
    %584 = vmatprep.subr.bf16.mxu0 0
    %585 = vmatpush1.bf16.xpose.msra.mxu0 0
    %586 = vmatprep.mubr.bf16.mxu0 0
    %587 = vmatmul.mubr.bf16.gmra.mrb[0].mxu0 %v549
    %v588 = vpop.f32.mrb[0].mxu0
    %v589 = vadd.f32 0.0, %v588
    %v590 = vpop.f32.mrb[0].mxu0
    %v591 = vpop.f32.mrb[0].mxu0
    %v592 = vpop.f32.mrb[0].mxu0
    %593 = vdwg.mxu0
    %v594 = vld [vmem:[#allocation2] sm:$0xff]
    %v595 = vld [vmem:[#allocation2 + $0x8] sm:$0xff]
    %v596 = vld [vmem:[#allocation2 + $0x10] sm:$0xff]
    %v597 = vld [vmem:[#allocation2 + $0x18] sm:$0xff]
    %v598 = vld [vmem:[#allocation2 + $0x20] sm:$0xff]
    %v599 = vld [vmem:[#allocation2 + $0x28] sm:$0xff]
    %v600 = vld [vmem:[#allocation2 + $0x30] sm:$0xff]
    %v601 = vld [vmem:[#allocation2 + $0x38] sm:$0xff]
    %v602 = vsub.f32 1.0, %v594
    %v603 = vsub.f32 1.0, %v595
    %v604 = vsub.f32 1.0, %v596
    %v605 = vsub.f32 1.0, %v597
    %v606 = vsub.f32 1.0, %v598
    %v607 = vsub.f32 1.0, %v599
    %v608 = vsub.f32 1.0, %v600
    %v609 = vsub.f32 1.0, %v601
    %v610 = vmul.f32 %v246, %v602
    %v611 = vmul.f32 %v295, %v603
    %v612 = vmul.f32 %v344, %v604
    %v613 = vmul.f32 %v393, %v605
    %v614 = vmul.f32 %v442, %v606
    %v615 = vmul.f32 %v491, %v607
    %v616 = vmul.f32 %v540, %v608
    %v617 = vmul.f32 %v589, %v609
    %v618 = vmul.f32 %v594, 1e-09
    %v619 = vmul.f32 %v595, 1e-09
    %v620 = vmul.f32 %v596, 1e-09
    %v621 = vmul.f32 %v597, 1e-09
    %v622 = vmul.f32 %v598, 1e-09
    %v623 = vmul.f32 %v599, 1e-09
    %v624 = vmul.f32 %v600, 1e-09
    %v625 = vmul.f32 %v601, 1e-09
    %v626 = vadd.f32 %v610, %v618
    %v627 = vadd.f32 %v611, %v619
    %v628 = vadd.f32 %v612, %v620
    %v629 = vadd.f32 %v613, %v621
    %v630 = vadd.f32 %v614, %v622
    %v631 = vadd.f32 %v615, %v623
    %v632 = vadd.f32 %v616, %v624
    %v633 = vadd.f32 %v617, %v625
    %v634 = vsel %vm204, %v626, -inf
    %635 = vmax.xlane.f32.xlu0 %v634
    %v636 = vpop.xlane.xlu0 %635
    %v637 = vsel %vm204, %v627, -inf
    %638 = vmax.xlane.f32.xlu0 %v637
    %v639 = vpop.xlane.xlu0 %638
    %v640 = vsel %vm204, %v628, -inf
    %641 = vmax.xlane.f32.xlu0 %v640
    %v642 = vpop.xlane.xlu0 %641
    %v643 = vsel %vm204, %v629, -inf
    %644 = vmax.xlane.f32.xlu0 %v643
    %v645 = vpop.xlane.xlu0 %644
    %v646 = vsel %vm204, %v630, -inf
    %647 = vmax.xlane.f32.xlu0 %v646
    %v648 = vpop.xlane.xlu0 %647
    %v649 = vsel %vm204, %v631, -inf
    %650 = vmax.xlane.f32.xlu0 %v649
    %v651 = vpop.xlane.xlu0 %650
    %v652 = vsel %vm204, %v632, -inf
    %653 = vmax.xlane.f32.xlu0 %v652
    %v654 = vpop.xlane.xlu0 %653
    %v655 = vsel %vm204, %v633, -inf
    %656 = vmax.xlane.f32.xlu0 %v655
    %v657 = vpop.xlane.xlu0 %656
    %v658 = vsub.f32 %v626, %v636
    %v659 = vsub.f32 %v627, %v639
    %v660 = vsub.f32 %v628, %v642
    %v661 = vsub.f32 %v629, %v645
    %v662 = vsub.f32 %v630, %v648
    %v663 = vsub.f32 %v631, %v651
    %v664 = vsub.f32 %v632, %v654
    %v665 = vsub.f32 %v633, %v657
    %v666 = vmul.f32 %v658, 1.442695
    %v667 = vpow.pop %v666
    %v668 = vmul.f32 %v659, 1.442695
    %v669 = vpow.pop %v668
    %v670 = vmul.f32 %v660, 1.442695
    %v671 = vpow.pop %v670
    %v672 = vmul.f32 %v661, 1.442695
    %v673 = vpow.pop %v672
    %v674 = vmul.f32 %v662, 1.442695
    %v675 = vpow.pop %v674
    %v676 = vmul.f32 %v663, 1.442695
    %v677 = vpow.pop %v676
    %v678 = vmul.f32 %v664, 1.442695
    %v679 = vpow.pop %v678
    %v680 = vmul.f32 %v665, 1.442695
    %v681 = vpow.pop %v680
    %v682 = vsel %vm204, %v667, 0.0
    %683 = vadd.xlane.f32.xlu0 %v682
    %v684 = vpop.xlane.xlu0 %683
    %v685 = vsel %vm204, %v669, 0.0
    %686 = vadd.xlane.f32.xlu0 %v685
    %v687 = vpop.xlane.xlu0 %686
    %v688 = vsel %vm204, %v671, 0.0
    %689 = vadd.xlane.f32.xlu0 %v688
    %v690 = vpop.xlane.xlu0 %689
    %v691 = vsel %vm204, %v673, 0.0
    %692 = vadd.xlane.f32.xlu0 %v691
    %v693 = vpop.xlane.xlu0 %692
    %v694 = vsel %vm204, %v675, 0.0
    %695 = vadd.xlane.f32.xlu0 %v694
    %v696 = vpop.xlane.xlu0 %695
    %v697 = vsel %vm204, %v677, 0.0
    %698 = vadd.xlane.f32.xlu0 %v697
    %v699 = vpop.xlane.xlu0 %698
    %v700 = vsel %vm204, %v679, 0.0
    %701 = vadd.xlane.f32.xlu0 %v700
    %v702 = vpop.xlane.xlu0 %701
    %v703 = vsel %vm204, %v681, 0.0
    %704 = vadd.xlane.f32.xlu0 %v703
    %v705 = vpop.xlane.xlu0 %704
    %v706 = vrcp.pop %v684
    %v707 = vmul.f32 %v667, %v706
    %v708 = vrcp.pop %v687
    %v709 = vmul.f32 %v669, %v708
    %v710 = vrcp.pop %v690
    %v711 = vmul.f32 %v671, %v710
    %v712 = vrcp.pop %v693
    %v713 = vmul.f32 %v673, %v712
    %v714 = vrcp.pop %v696
    %v715 = vmul.f32 %v675, %v714
    %v716 = vrcp.pop %v699
    %v717 = vmul.f32 %v677, %v716
    %v718 = vrcp.pop %v702
    %v719 = vmul.f32 %v679, %v718
    %v720 = vrcp.pop %v705
    %v721 = vmul.f32 %v681, %v720
    %v722 = vpack.c.bf16 %v707, %v707
    %v723 = vpack.c.bf16 %v709, %v709
    %v724 = vpack.c.bf16 %v711, %v711
    %v725 = vpack.c.bf16 %v713, %v713
    %v726 = vpack.c.bf16 %v715, %v715
    %v727 = vpack.c.bf16 %v717, %v717
    %v728 = vpack.c.bf16 %v719, %v719
    %v729 = vpack.c.bf16 %v721, %v721
    %730 = vrot.lane.b32.xlu0 %v193, 64
    %v731 = vpop.permute.xlu0 %730
    %v733 = vsel %vm204, %v722, 0
    %vm735 = vcmask 1043456
    %v737 = vsel %vm735, %v731, 0
    %739 = vmatprep.subr.bf16.mxu0 0
    %740 = vmatpush1.bf16.msra.mxu0 %v737
    %741 = vmatprep.subr.bf16.mxu0 0
    %742 = vmatpush1.bf16.msra.mxu0 0
    %743 = vmatprep.subr.bf16.mxu0 0
    %744 = vmatpush1.bf16.msra.mxu0 0
    %745 = vmatprep.subr.bf16.mxu0 0
    %746 = vmatpush1.bf16.msra.mxu0 0
    %747 = vmatprep.subr.bf16.mxu0 0
    %748 = vmatpush1.bf16.msra.mxu0 0
    %749 = vmatprep.subr.bf16.mxu0 0
    %750 = vmatpush1.bf16.msra.mxu0 0
    %751 = vmatprep.subr.bf16.mxu0 0
    %752 = vmatpush1.bf16.msra.mxu0 0
    %753 = vmatprep.subr.bf16.mxu0 0
    %754 = vmatpush1.bf16.msra.mxu0 0
    %755 = vmatprep.subr.bf16.mxu0 0
    %756 = vmatpush1.bf16.msra.mxu0 0
    %757 = vmatprep.subr.bf16.mxu0 0
    %758 = vmatpush1.bf16.msra.mxu0 0
    %759 = vmatprep.subr.bf16.mxu0 0
    %760 = vmatpush1.bf16.msra.mxu0 0
    %761 = vmatprep.subr.bf16.mxu0 0
    %762 = vmatpush1.bf16.msra.mxu0 0
    %763 = vmatprep.subr.bf16.mxu0 0
    %764 = vmatpush1.bf16.msra.mxu0 0
    %765 = vmatprep.subr.bf16.mxu0 0
    %766 = vmatpush1.bf16.msra.mxu0 0
    %767 = vmatprep.subr.bf16.mxu0 0
    %768 = vmatpush1.bf16.msra.mxu0 0
    %769 = vmatprep.subr.bf16.mxu0 0
    %770 = vmatpush1.bf16.msra.mxu0 0
    %771 = vmatprep.mubr.bf16.mxu0 0
    %772 = vmatmul.mubr.bf16.gmra.mrb[0].mxu0 %v733
    %v773 = vpop.f32.mrb[0].mxu0
    %v774 = vadd.f32 0.0, %v773
    %v775 = vpop.f32.mrb[0].mxu0
    %v776 = vpop.f32.mrb[0].mxu0
    %v777 = vpop.f32.mrb[0].mxu0
    %778 = vdwg.mxu0
    %779 = vrot.lane.b32.xlu0 %v194, 64
    %v780 = vpop.permute.xlu0 %779
    %v782 = vsel %vm204, %v723, 0
    %v785 = vsel %vm735, %v780, 0
    %787 = vmatprep.subr.bf16.mxu0 0
    %788 = vmatpush1.bf16.msra.mxu0 %v785
    %789 = vmatprep.subr.bf16.mxu0 0
    %790 = vmatpush1.bf16.msra.mxu0 0
    %791 = vmatprep.subr.bf16.mxu0 0
    %792 = vmatpush1.bf16.msra.mxu0 0
    %793 = vmatprep.subr.bf16.mxu0 0
    %794 = vmatpush1.bf16.msra.mxu0 0
    %795 = vmatprep.subr.bf16.mxu0 0
    %796 = vmatpush1.bf16.msra.mxu0 0
    %797 = vmatprep.subr.bf16.mxu0 0
    %798 = vmatpush1.bf16.msra.mxu0 0
    %799 = vmatprep.subr.bf16.mxu0 0
    %800 = vmatpush1.bf16.msra.mxu0 0
    %801 = vmatprep.subr.bf16.mxu0 0
    %802 = vmatpush1.bf16.msra.mxu0 0
    %803 = vmatprep.subr.bf16.mxu0 0
    %804 = vmatpush1.bf16.msra.mxu0 0
    %805 = vmatprep.subr.bf16.mxu0 0
    %806 = vmatpush1.bf16.msra.mxu0 0
    %807 = vmatprep.subr.bf16.mxu0 0
    %808 = vmatpush1.bf16.msra.mxu0 0
    %809 = vmatprep.subr.bf16.mxu0 0
    %810 = vmatpush1.bf16.msra.mxu0 0
    %811 = vmatprep.subr.bf16.mxu0 0
    %812 = vmatpush1.bf16.msra.mxu0 0
    %813 = vmatprep.subr.bf16.mxu0 0
    %814 = vmatpush1.bf16.msra.mxu0 0
    %815 = vmatprep.subr.bf16.mxu0 0
    %816 = vmatpush1.bf16.msra.mxu0 0
    %817 = vmatprep.subr.bf16.mxu0 0
    %818 = vmatpush1.bf16.msra.mxu0 0
    %819 = vmatprep.mubr.bf16.mxu0 0
    %820 = vmatmul.mubr.bf16.gmra.mrb[0].mxu0 %v782
    %v821 = vpop.f32.mrb[0].mxu0
    %v822 = vadd.f32 0.0, %v821
    %v823 = vpop.f32.mrb[0].mxu0
    %v824 = vpop.f32.mrb[0].mxu0
    %v825 = vpop.f32.mrb[0].mxu0
    %826 = vdwg.mxu0
    %827 = vrot.lane.b32.xlu0 %v195, 64
    %v828 = vpop.permute.xlu0 %827
    %v830 = vsel %vm204, %v724, 0
    %v833 = vsel %vm735, %v828, 0
    %835 = vmatprep.subr.bf16.mxu0 0
    %836 = vmatpush1.bf16.msra.mxu0 %v833
    %837 = vmatprep.subr.bf16.mxu0 0
    %838 = vmatpush1.bf16.msra.mxu0 0
    %839 = vmatprep.subr.bf16.mxu0 0
    %840 = vmatpush1.bf16.msra.mxu0 0
    %841 = vmatprep.subr.bf16.mxu0 0
    %842 = vmatpush1.bf16.msra.mxu0 0
    %843 = vmatprep.subr.bf16.mxu0 0
    %844 = vmatpush1.bf16.msra.mxu0 0
    %845 = vmatprep.subr.bf16.mxu0 0
    %846 = vmatpush1.bf16.msra.mxu0 0
    %847 = vmatprep.subr.bf16.mxu0 0
    %848 = vmatpush1.bf16.msra.mxu0 0
    %849 = vmatprep.subr.bf16.mxu0 0
    %850 = vmatpush1.bf16.msra.mxu0 0
    %851 = vmatprep.subr.bf16.mxu0 0
    %852 = vmatpush1.bf16.msra.mxu0 0
    %853 = vmatprep.subr.bf16.mxu0 0
    %854 = vmatpush1.bf16.msra.mxu0 0
    %855 = vmatprep.subr.bf16.mxu0 0
    %856 = vmatpush1.bf16.msra.mxu0 0
    %857 = vmatprep.subr.bf16.mxu0 0
    %858 = vmatpush1.bf16.msra.mxu0 0
    %859 = vmatprep.subr.bf16.mxu0 0
    %860 = vmatpush1.bf16.msra.mxu0 0
    %861 = vmatprep.subr.bf16.mxu0 0
    %862 = vmatpush1.bf16.msra.mxu0 0
    %863 = vmatprep.subr.bf16.mxu0 0
    %864 = vmatpush1.bf16.msra.mxu0 0
    %865 = vmatprep.subr.bf16.mxu0 0
    %866 = vmatpush1.bf16.msra.mxu0 0
    %867 = vmatprep.mubr.bf16.mxu0 0
    %868 = vmatmul.mubr.bf16.gmra.mrb[0].mxu0 %v830
    %v869 = vpop.f32.mrb[0].mxu0
    %v870 = vadd.f32 0.0, %v869
    %v871 = vpop.f32.mrb[0].mxu0
    %v872 = vpop.f32.mrb[0].mxu0
    %v873 = vpop.f32.mrb[0].mxu0
    %874 = vdwg.mxu0
    %875 = vrot.lane.b32.xlu0 %v196, 64
    %v876 = vpop.permute.xlu0 %875
    %v878 = vsel %vm204, %v725, 0
    %v881 = vsel %vm735, %v876, 0
    %883 = vmatprep.subr.bf16.mxu0 0
    %884 = vmatpush1.bf16.msra.mxu0 %v881
    %885 = vmatprep.subr.bf16.mxu0 0
    %886 = vmatpush1.bf16.msra.mxu0 0
    %887 = vmatprep.subr.bf16.mxu0 0
    %888 = vmatpush1.bf16.msra.mxu0 0
    %889 = vmatprep.subr.bf16.mxu0 0
    %890 = vmatpush1.bf16.msra.mxu0 0
    %891 = vmatprep.subr.bf16.mxu0 0
    %892 = vmatpush1.bf16.msra.mxu0 0
    %893 = vmatprep.subr.bf16.mxu0 0
    %894 = vmatpush1.bf16.msra.mxu0 0
    %895 = vmatprep.subr.bf16.mxu0 0
    %896 = vmatpush1.bf16.msra.mxu0 0
    %897 = vmatprep.subr.bf16.mxu0 0
    %898 = vmatpush1.bf16.msra.mxu0 0
    %899 = vmatprep.subr.bf16.mxu0 0
    %900 = vmatpush1.bf16.msra.mxu0 0
    %901 = vmatprep.subr.bf16.mxu0 0
    %902 = vmatpush1.bf16.msra.mxu0 0
    %903 = vmatprep.subr.bf16.mxu0 0
    %904 = vmatpush1.bf16.msra.mxu0 0
    %905 = vmatprep.subr.bf16.mxu0 0
    %906 = vmatpush1.bf16.msra.mxu0 0
    %907 = vmatprep.subr.bf16.mxu0 0
    %908 = vmatpush1.bf16.msra.mxu0 0
    %909 = vmatprep.subr.bf16.mxu0 0
    %910 = vmatpush1.bf16.msra.mxu0 0
    %911 = vmatprep.subr.bf16.mxu0 0
    %912 = vmatpush1.bf16.msra.mxu0 0
    %913 = vmatprep.subr.bf16.mxu0 0
    %914 = vmatpush1.bf16.msra.mxu0 0
    %915 = vmatprep.mubr.bf16.mxu0 0
    %916 = vmatmul.mubr.bf16.gmra.mrb[0].mxu0 %v878
    %v917 = vpop.f32.mrb[0].mxu0
    %v918 = vadd.f32 0.0, %v917
    %v919 = vpop.f32.mrb[0].mxu0
    %v920 = vpop.f32.mrb[0].mxu0
    %v921 = vpop.f32.mrb[0].mxu0
    %922 = vdwg.mxu0
    %923 = vrot.lane.b32.xlu0 %v197, 64
    %v924 = vpop.permute.xlu0 %923
    %v926 = vsel %vm204, %v726, 0
    %v929 = vsel %vm735, %v924, 0
    %931 = vmatprep.subr.bf16.mxu0 0
    %932 = vmatpush1.bf16.msra.mxu0 %v929
    %933 = vmatprep.subr.bf16.mxu0 0
    %934 = vmatpush1.bf16.msra.mxu0 0
    %935 = vmatprep.subr.bf16.mxu0 0
    %936 = vmatpush1.bf16.msra.mxu0 0
    %937 = vmatprep.subr.bf16.mxu0 0
    %938 = vmatpush1.bf16.msra.mxu0 0
    %939 = vmatprep.subr.bf16.mxu0 0
    %940 = vmatpush1.bf16.msra.mxu0 0
    %941 = vmatprep.subr.bf16.mxu0 0
    %942 = vmatpush1.bf16.msra.mxu0 0
    %943 = vmatprep.subr.bf16.mxu0 0
    %944 = vmatpush1.bf16.msra.mxu0 0
    %945 = vmatprep.subr.bf16.mxu0 0
    %946 = vmatpush1.bf16.msra.mxu0 0
    %947 = vmatprep.subr.bf16.mxu0 0
    %948 = vmatpush1.bf16.msra.mxu0 0
    %949 = vmatprep.subr.bf16.mxu0 0
    %950 = vmatpush1.bf16.msra.mxu0 0
    %951 = vmatprep.subr.bf16.mxu0 0
    %952 = vmatpush1.bf16.msra.mxu0 0
    %953 = vmatprep.subr.bf16.mxu0 0
    %954 = vmatpush1.bf16.msra.mxu0 0
    %955 = vmatprep.subr.bf16.mxu0 0
    %956 = vmatpush1.bf16.msra.mxu0 0
    %957 = vmatprep.subr.bf16.mxu0 0
    %958 = vmatpush1.bf16.msra.mxu0 0
    %959 = vmatprep.subr.bf16.mxu0 0
    %960 = vmatpush1.bf16.msra.mxu0 0
    %961 = vmatprep.subr.bf16.mxu0 0
    %962 = vmatpush1.bf16.msra.mxu0 0
    %963 = vmatprep.mubr.bf16.mxu0 0
    %964 = vmatmul.mubr.bf16.gmra.mrb[0].mxu0 %v926
    %v965 = vpop.f32.mrb[0].mxu0
    %v966 = vadd.f32 0.0, %v965
    %v967 = vpop.f32.mrb[0].mxu0
    %v968 = vpop.f32.mrb[0].mxu0
    %v969 = vpop.f32.mrb[0].mxu0
    %970 = vdwg.mxu0
    %971 = vrot.lane.b32.xlu0 %v198, 64
    %v972 = vpop.permute.xlu0 %971
    %v974 = vsel %vm204, %v727, 0
    %v977 = vsel %vm735, %v972, 0
    %979 = vmatprep.subr.bf16.mxu0 0
    %980 = vmatpush1.bf16.msra.mxu0 %v977
    %981 = vmatprep.subr.bf16.mxu0 0
    %982 = vmatpush1.bf16.msra.mxu0 0
    %983 = vmatprep.subr.bf16.mxu0 0
    %984 = vmatpush1.bf16.msra.mxu0 0
    %985 = vmatprep.subr.bf16.mxu0 0
    %986 = vmatpush1.bf16.msra.mxu0 0
    %987 = vmatprep.subr.bf16.mxu0 0
    %988 = vmatpush1.bf16.msra.mxu0 0
    %989 = vmatprep.subr.bf16.mxu0 0
    %990 = vmatpush1.bf16.msra.mxu0 0
    %991 = vmatprep.subr.bf16.mxu0 0
    %992 = vmatpush1.bf16.msra.mxu0 0
    %993 = vmatprep.subr.bf16.mxu0 0
    %994 = vmatpush1.bf16.msra.mxu0 0
    %995 = vmatprep.subr.bf16.mxu0 0
    %996 = vmatpush1.bf16.msra.mxu0 0
    %997 = vmatprep.subr.bf16.mxu0 0
    %998 = vmatpush1.bf16.msra.mxu0 0
    %999 = vmatprep.subr.bf16.mxu0 0
    %1000 = vmatpush1.bf16.msra.mxu0 0
    %1001 = vmatprep.subr.bf16.mxu0 0
    %1002 = vmatpush1.bf16.msra.mxu0 0
    %1003 = vmatprep.subr.bf16.mxu0 0
    %1004 = vmatpush1.bf16.msra.mxu0 0
    %1005 = vmatprep.subr.bf16.mxu0 0
    %1006 = vmatpush1.bf16.msra.mxu0 0
    %1007 = vmatprep.subr.bf16.mxu0 0
    %1008 = vmatpush1.bf16.msra.mxu0 0
    %1009 = vmatprep.subr.bf16.mxu0 0
    %1010 = vmatpush1.bf16.msra.mxu0 0
    %1011 = vmatprep.mubr.bf16.mxu0 0
    %1012 = vmatmul.mubr.bf16.gmra.mrb[0].mxu0 %v974
    %v1013 = vpop.f32.mrb[0].mxu0
    %v1014 = vadd.f32 0.0, %v1013
    %v1015 = vpop.f32.mrb[0].mxu0
    %v1016 = vpop.f32.mrb[0].mxu0
    %v1017 = vpop.f32.mrb[0].mxu0
    %1018 = vdwg.mxu0
    %1019 = vrot.lane.b32.xlu0 %v199, 64
    %v1020 = vpop.permute.xlu0 %1019
    %v1022 = vsel %vm204, %v728, 0
    %v1025 = vsel %vm735, %v1020, 0
    %1027 = vmatprep.subr.bf16.mxu0 0
    %1028 = vmatpush1.bf16.msra.mxu0 %v1025
    %1029 = vmatprep.subr.bf16.mxu0 0
    %1030 = vmatpush1.bf16.msra.mxu0 0
    %1031 = vmatprep.subr.bf16.mxu0 0
    %1032 = vmatpush1.bf16.msra.mxu0 0
    %1033 = vmatprep.subr.bf16.mxu0 0
    %1034 = vmatpush1.bf16.msra.mxu0 0
    %1035 = vmatprep.subr.bf16.mxu0 0
    %1036 = vmatpush1.bf16.msra.mxu0 0
    %1037 = vmatprep.subr.bf16.mxu0 0
    %1038 = vmatpush1.bf16.msra.mxu0 0
    %1039 = vmatprep.subr.bf16.mxu0 0
    %1040 = vmatpush1.bf16.msra.mxu0 0
    %1041 = vmatprep.subr.bf16.mxu0 0
    %1042 = vmatpush1.bf16.msra.mxu0 0
    %1043 = vmatprep.subr.bf16.mxu0 0
    %1044 = vmatpush1.bf16.msra.mxu0 0
    %1045 = vmatprep.subr.bf16.mxu0 0
    %1046 = vmatpush1.bf16.msra.mxu0 0
    %1047 = vmatprep.subr.bf16.mxu0 0
    %1048 = vmatpush1.bf16.msra.mxu0 0
    %1049 = vmatprep.subr.bf16.mxu0 0
    %1050 = vmatpush1.bf16.msra.mxu0 0
    %1051 = vmatprep.subr.bf16.mxu0 0
    %1052 = vmatpush1.bf16.msra.mxu0 0
    %1053 = vmatprep.subr.bf16.mxu0 0
    %1054 = vmatpush1.bf16.msra.mxu0 0
    %1055 = vmatprep.subr.bf16.mxu0 0
    %1056 = vmatpush1.bf16.msra.mxu0 0
    %1057 = vmatprep.subr.bf16.mxu0 0
    %1058 = vmatpush1.bf16.msra.mxu0 0
    %1059 = vmatprep.mubr.bf16.mxu0 0
    %1060 = vmatmul.mubr.bf16.gmra.mrb[0].mxu0 %v1022
    %v1061 = vpop.f32.mrb[0].mxu0
    %v1062 = vadd.f32 0.0, %v1061
    %v1063 = vpop.f32.mrb[0].mxu0
    %v1064 = vpop.f32.mrb[0].mxu0
    %v1065 = vpop.f32.mrb[0].mxu0
    %1066 = vdwg.mxu0
    %1067 = vrot.lane.b32.xlu0 %v200, 64
    %v1068 = vpop.permute.xlu0 %1067
    %v1070 = vsel %vm204, %v729, 0
    %v1073 = vsel %vm735, %v1068, 0
    %1075 = vmatprep.subr.bf16.mxu0 0
    %1076 = vmatpush1.bf16.msra.mxu0 %v1073
    %1077 = vmatprep.subr.bf16.mxu0 0
    %1078 = vmatpush1.bf16.msra.mxu0 0
    %1079 = vmatprep.subr.bf16.mxu0 0
    %1080 = vmatpush1.bf16.msra.mxu0 0
    %1081 = vmatprep.subr.bf16.mxu0 0
    %1082 = vmatpush1.bf16.msra.mxu0 0
    %1083 = vmatprep.subr.bf16.mxu0 0
    %1084 = vmatpush1.bf16.msra.mxu0 0
    %1085 = vmatprep.subr.bf16.mxu0 0
    %1086 = vmatpush1.bf16.msra.mxu0 0
    %1087 = vmatprep.subr.bf16.mxu0 0
    %1088 = vmatpush1.bf16.msra.mxu0 0
    %1089 = vmatprep.subr.bf16.mxu0 0
    %1090 = vmatpush1.bf16.msra.mxu0 0
    %1091 = vmatprep.subr.bf16.mxu0 0
    %1092 = vmatpush1.bf16.msra.mxu0 0
    %1093 = vmatprep.subr.bf16.mxu0 0
    %1094 = vmatpush1.bf16.msra.mxu0 0
    %1095 = vmatprep.subr.bf16.mxu0 0
    %1096 = vmatpush1.bf16.msra.mxu0 0
    %1097 = vmatprep.subr.bf16.mxu0 0
    %1098 = vmatpush1.bf16.msra.mxu0 0
    %1099 = vmatprep.subr.bf16.mxu0 0
    %1100 = vmatpush1.bf16.msra.mxu0 0
    %1101 = vmatprep.subr.bf16.mxu0 0
    %1102 = vmatpush1.bf16.msra.mxu0 0
    %1103 = vmatprep.subr.bf16.mxu0 0
    %1104 = vmatpush1.bf16.msra.mxu0 0
    %1105 = vmatprep.subr.bf16.mxu0 0
    %1106 = vmatpush1.bf16.msra.mxu0 0
    %1107 = vmatprep.mubr.bf16.mxu0 0
    %1108 = vmatmul.mubr.bf16.gmra.mrb[0].mxu0 %v1070
    %v1109 = vpop.f32.mrb[0].mxu0
    %v1110 = vadd.f32 0.0, %v1109
    %v1111 = vpop.f32.mrb[0].mxu0
    %v1112 = vpop.f32.mrb[0].mxu0
    %v1113 = vpop.f32.mrb[0].mxu0
    %1114 = vdwg.mxu0
    %1117 = vrot.lane.b32.xlu0 %v870, 8
    %v1118 = vpop.permute.xlu0 %1117
    %1119 = vrot.lane.b32.xlu0 %v918, 8
    %v1120 = vpop.permute.xlu0 %1119
    %1125 = vrot.lane.b32.xlu0 %v966, 16
    %v1126 = vpop.permute.xlu0 %1125
    %1127 = vrot.lane.b32.xlu0 %v1014, 16
    %v1128 = vpop.permute.xlu0 %1127
    %1133 = vrot.lane.b32.xlu0 %v1062, 24
    %v1134 = vpop.permute.xlu0 %1133
    %1135 = vrot.lane.b32.xlu0 %v1110, 24
    %v1136 = vpop.permute.xlu0 %1135
    %v1139 = vsel %vm204, %v774, %v1118
    %v1140 = vsel %vm204, %v822, %v1120
    %vm1141 = vcmask 130048
    %v1142 = vsel %vm1141, %v1139, %v1126
    %v1143 = vsel %vm1141, %v1140, %v1128
    %vm1144 = vcmask 195584
    %v1145 = vsel %vm1144, %v1142, %v1134
    %v1146 = vsel %vm1144, %v1143, %v1136
    %v1147 = vpack.c.bf16 %v1146, %v1145
    %v1148 = vld [vmem:[%s4] sm:$0xf]
    %v1149 = vld [vmem:[%s4 + $0x4] sm:$0xf]
    %v1150 = vld [vmem:[%s4 + $0x8] sm:$0xf]
    %v1151 = vld [vmem:[%s4 + $0xc] sm:$0xf]
    %v1152 = vlaneseq
    %v1153 = vshrl.u32 %v1152, 7
    %v1154 = vsub.s32 0, %v1153
    %v1155 = vrot.slane %v64, %v1154
    %v1160 = vunpack.c.l.b16 %v1148
    %v1161 = vunpack.c.l.b16 %v1149
    %v1162 = vunpack.c.l.b16 %v1150
    %v1163 = vunpack.c.l.b16 %v1151
    %v1164 = vpack.c.b16 %v1161, %v1160
    %v1165 = vpack.c.b16 %v1163, %v1162
    %v1169 = vsel %vm65, %v1147, 0
    %1171 = vmatprep.subr.bf16.mxu0 0
    %1172 = vmatpush1.bf16.msra.mxu0 %v1164
    %1173 = vmatprep.subr.bf16.mxu0 0
    %1174 = vmatpush1.bf16.msra.mxu0 %v1165
    %1175 = vmatprep.subr.bf16.mxu0 0
    %1176 = vmatpush1.bf16.msra.mxu0 0
    %1177 = vmatprep.subr.bf16.mxu0 0
    %1178 = vmatpush1.bf16.msra.mxu0 0
    %1179 = vmatprep.subr.bf16.mxu0 0
    %1180 = vmatpush1.bf16.msra.mxu0 0
    %1181 = vmatprep.subr.bf16.mxu0 0
    %1182 = vmatpush1.bf16.msra.mxu0 0
    %1183 = vmatprep.subr.bf16.mxu0 0
    %1184 = vmatpush1.bf16.msra.mxu0 0
    %1185 = vmatprep.subr.bf16.mxu0 0
    %1186 = vmatpush1.bf16.msra.mxu0 0
    %1187 = vmatprep.subr.bf16.mxu0 0
    %1188 = vmatpush1.bf16.msra.mxu0 0
    %1189 = vmatprep.subr.bf16.mxu0 0
    %1190 = vmatpush1.bf16.msra.mxu0 0
    %1191 = vmatprep.subr.bf16.mxu0 0
    %1192 = vmatpush1.bf16.msra.mxu0 0
    %1193 = vmatprep.subr.bf16.mxu0 0
    %1194 = vmatpush1.bf16.msra.mxu0 0
    %1195 = vmatprep.subr.bf16.mxu0 0
    %1196 = vmatpush1.bf16.msra.mxu0 0
    %1197 = vmatprep.subr.bf16.mxu0 0
    %1198 = vmatpush1.bf16.msra.mxu0 0
    %1199 = vmatprep.subr.bf16.mxu0 0
    %1200 = vmatpush1.bf16.msra.mxu0 0
    %1201 = vmatprep.subr.bf16.mxu0 0
    %1202 = vmatpush1.bf16.msra.mxu0 0
    %1203 = vmatprep.mubr.bf16.mxu0 0
    %1204 = vmatmul.mubr.bf16.gmra.mrb[0].mxu0 %v1169
    %v1205 = vpop.f32.mrb[0].mxu0
    %v1206 = vadd.f32 %v1155, %v1205
    %v1207 = vpop.f32.mrb[0].mxu0
    %v1208 = vpop.f32.mrb[0].mxu0
    %v1209 = vadd.f32 %v1155, %v1208
    %v1210 = vpop.f32.mrb[0].mxu0
    %1211 = vdwg.mxu0
    %v1212 = vadd.f32 %v62, %v1206
    %v1213 = vadd.f32 %v63, %v1209
    %v1214 = vsel %vm65, %v1212, 0.0
    %1215 = vadd.xlane.f32.xlu0 %v1214
    %v1216 = vpop.xlane.xlu0 %1215
    %v1217 = vsel %vm65, %v1213, 0.0
    %1218 = vadd.xlane.f32.xlu0 %v1217
    %v1219 = vpop.xlane.xlu0 %1218
    %v1220 = vmul.f32 %v1216, %v72
    %v1221 = vmul.f32 %v1219, %v72
    %v1222 = vsub.f32 %v1212, %v1220
    %v1223 = vsub.f32 %v1213, %v1221
    %v1224 = vmul.f32 %v1222, %v1222
    %v1225 = vmul.f32 %v1223, %v1223
    %v1226 = vsel %vm65, %v1224, 0.0
    %1227 = vadd.xlane.f32.xlu0 %v1226
    %v1228 = vpop.xlane.xlu0 %1227
    %v1229 = vsel %vm65, %v1225, 0.0
    %1230 = vadd.xlane.f32.xlu0 %v1229
    %v1231 = vpop.xlane.xlu0 %1230
    %v1232 = vmul.f32 %v1228, %v72
    %v1233 = vmul.f32 %v1231, %v72
    %v1234 = vadd.f32 %v1232, 1e-05
    %v1235 = vadd.f32 %v1233, 1e-05
    %v1236 = vrsqrt.pop %v1234
    %v1237 = vrsqrt.pop %v1235
    %v1238 = vmul.f32 %v1222, %v1236
    %v1239 = vmul.f32 %v1223, %v1237
    %v1240 = vlaneseq
    %v1241 = vshrl.u32 %v1240, 7
    %v1242 = vsub.s32 3, %v1241
    %v1243 = vrot.slane %v64, %v1242
    %v1244 = vmul.f32 %v1238, %v1243
    %v1245 = vmul.f32 %v1239, %v1243
    %v1246 = vlaneseq
    %v1247 = vshrl.u32 %v1246, 7
    %v1248 = vsub.s32 4, %v1247
    %v1249 = vrot.slane %v64, %v1248
    %v1250 = vadd.f32 %v1244, %v1249
    %v1251 = vadd.f32 %v1245, %v1249
    %v1252 = vpack.c.bf16 %v1251, %v1250
    %v1253 = vld [vmem:[#allocation5] sm:$0xf]
    %v1254 = vld [vmem:[#allocation5 + $0x4] sm:$0xf]
    %v1255 = vld [vmem:[#allocation5 + $0x8] sm:$0xf]
    %v1256 = vld [vmem:[#allocation5 + $0xc] sm:$0xf]
    %v1257 = vld [vmem:[%s6] sm:$0x1]
    %v1259 = vlaneseq
    %v1260 = vshrl.u32 %v1259, 7
    %v1261 = vsub.s32 0, %v1260
    %v1262 = vrot.slane %v1257, %v1261
    %v1268 = vunpack.c.l.b16 %v1253
    %v1269 = vunpack.c.l.b16 %v1254
    %v1270 = vunpack.c.l.b16 %v1255
    %v1271 = vunpack.c.l.b16 %v1256
    %v1272 = vpack.c.b16 %v1269, %v1268
    %v1273 = vpack.c.b16 %v1271, %v1270
    %v1277 = vsel %vm65, %v1252, 0
    %1279 = vmatprep.subr.bf16.mxu0 0
    %1280 = vmatpush1.bf16.msra.mxu0 %v1272
    %1281 = vmatprep.subr.bf16.mxu0 0
    %1282 = vmatpush1.bf16.msra.mxu0 %v1273
    %1283 = vmatprep.subr.bf16.mxu0 0
    %1284 = vmatpush1.bf16.msra.mxu0 0
    %1285 = vmatprep.subr.bf16.mxu0 0
    %1286 = vmatpush1.bf16.msra.mxu0 0
    %1287 = vmatprep.subr.bf16.mxu0 0
    %1288 = vmatpush1.bf16.msra.mxu0 0
    %1289 = vmatprep.subr.bf16.mxu0 0
    %1290 = vmatpush1.bf16.msra.mxu0 0
    %1291 = vmatprep.subr.bf16.mxu0 0
    %1292 = vmatpush1.bf16.msra.mxu0 0
    %1293 = vmatprep.subr.bf16.mxu0 0
    %1294 = vmatpush1.bf16.msra.mxu0 0
    %1295 = vmatprep.subr.bf16.mxu0 0
    %1296 = vmatpush1.bf16.msra.mxu0 0
    %1297 = vmatprep.subr.bf16.mxu0 0
    %1298 = vmatpush1.bf16.msra.mxu0 0
    %1299 = vmatprep.subr.bf16.mxu0 0
    %1300 = vmatpush1.bf16.msra.mxu0 0
    %1301 = vmatprep.subr.bf16.mxu0 0
    %1302 = vmatpush1.bf16.msra.mxu0 0
    %1303 = vmatprep.subr.bf16.mxu0 0
    %1304 = vmatpush1.bf16.msra.mxu0 0
    %1305 = vmatprep.subr.bf16.mxu0 0
    %1306 = vmatpush1.bf16.msra.mxu0 0
    %1307 = vmatprep.subr.bf16.mxu0 0
    %1308 = vmatpush1.bf16.msra.mxu0 0
    %1309 = vmatprep.subr.bf16.mxu0 0
    %1310 = vmatpush1.bf16.msra.mxu0 0
    %1311 = vmatprep.mubr.bf16.mxu0 0
    %1312 = vmatmul.mubr.bf16.gmra.mrb[0].mxu0 %v1277
    %v1313 = vpop.f32.mrb[0].mxu0
    %v1314 = vadd.f32 %v1262, %v1313
    %v1315 = vpop.f32.mrb[0].mxu0
    %v1316 = vpop.f32.mrb[0].mxu0
    %v1317 = vadd.f32 %v1262, %v1316
    %v1318 = vpop.f32.mrb[0].mxu0
    %1319 = vdwg.mxu0
    %v1320 = vmax.f32 %v1314, 0.0
    %v1321 = vmax.f32 %v1317, 0.0
    %v1322 = vpack.c.bf16 %v1321, %v1320
    %v1323 = vld [vmem:[%s7] sm:$0xf]
    %v1324 = vld [vmem:[%s7 + $0x4] sm:$0xf]
    %v1325 = vld [vmem:[%s7 + $0x8] sm:$0xf]
    %v1326 = vld [vmem:[%s7 + $0xc] sm:$0xf]
    %v1327 = vld [vmem:[%s7 + $0x10] sm:$0xf]
    %v1328 = vld [vmem:[%s7 + $0x14] sm:$0xf]
    %v1329 = vld [vmem:[%s7 + $0x18] sm:$0xf]
    %v1330 = vld [vmem:[%s7 + $0x1c] sm:$0xf]
    %v1331 = vlaneseq
    %v1332 = vshrl.u32 %v1331, 7
    %v1333 = vsub.s32 5, %v1332
    %v1334 = vrot.slane %v64, %v1333
    %v1343 = vunpack.c.l.b16 %v1323
    %v1344 = vunpack.c.l.b16 %v1324
    %v1345 = vunpack.c.l.b16 %v1325
    %v1346 = vunpack.c.l.b16 %v1326
    %v1347 = vunpack.c.l.b16 %v1327
    %v1348 = vunpack.c.l.b16 %v1328
    %v1349 = vunpack.c.l.b16 %v1329
    %v1350 = vunpack.c.l.b16 %v1330
    %v1351 = vpack.c.b16 %v1344, %v1343
    %v1352 = vpack.c.b16 %v1346, %v1345
    %v1353 = vpack.c.b16 %v1348, %v1347
    %v1354 = vpack.c.b16 %v1350, %v1349
    %vm1359 = vcmask 523264
    %v1361 = vsel %vm1359, %v1322, 0
    %1363 = vmatprep.subr.bf16.mxu0 0
    %1364 = vmatpush1.bf16.msra.mxu0 %v1351
    %1365 = vmatprep.subr.bf16.mxu0 0
    %1366 = vmatpush1.bf16.msra.mxu0 %v1352
    %1367 = vmatprep.subr.bf16.mxu0 0
    %1368 = vmatpush1.bf16.msra.mxu0 %v1353
    %1369 = vmatprep.subr.bf16.mxu0 0
    %1370 = vmatpush1.bf16.msra.mxu0 %v1354
    %1371 = vmatprep.subr.bf16.mxu0 0
    %1372 = vmatpush1.bf16.msra.mxu0 0
    %1373 = vmatprep.subr.bf16.mxu0 0
    %1374 = vmatpush1.bf16.msra.mxu0 0
    %1375 = vmatprep.subr.bf16.mxu0 0
    %1376 = vmatpush1.bf16.msra.mxu0 0
    %1377 = vmatprep.subr.bf16.mxu0 0
    %1378 = vmatpush1.bf16.msra.mxu0 0
    %1379 = vmatprep.subr.bf16.mxu0 0
    %1380 = vmatpush1.bf16.msra.mxu0 0
    %1381 = vmatprep.subr.bf16.mxu0 0
    %1382 = vmatpush1.bf16.msra.mxu0 0
    %1383 = vmatprep.subr.bf16.mxu0 0
    %1384 = vmatpush1.bf16.msra.mxu0 0
    %1385 = vmatprep.subr.bf16.mxu0 0
    %1386 = vmatpush1.bf16.msra.mxu0 0
    %1387 = vmatprep.subr.bf16.mxu0 0
    %1388 = vmatpush1.bf16.msra.mxu0 0
    %1389 = vmatprep.subr.bf16.mxu0 0
    %1390 = vmatpush1.bf16.msra.mxu0 0
    %1391 = vmatprep.subr.bf16.mxu0 0
    %1392 = vmatpush1.bf16.msra.mxu0 0
    %1393 = vmatprep.subr.bf16.mxu0 0
    %1394 = vmatpush1.bf16.msra.mxu0 0
    %1395 = vmatprep.mubr.bf16.mxu0 0
    %1396 = vmatmul.mubr.bf16.gmra.mrb[0].mxu0 %v1361
    %v1397 = vpop.f32.mrb[0].mxu0
    %v1398 = vadd.f32 %v1334, %v1397
    %v1399 = vpop.f32.mrb[0].mxu0
    %v1400 = vpop.f32.mrb[0].mxu0
    %v1401 = vadd.f32 %v1334, %v1400
    %v1402 = vpop.f32.mrb[0].mxu0
    %1403 = vdwg.mxu0
    %v1404 = vadd.f32 %v1212, %v1398
    %v1405 = vadd.f32 %v1213, %v1401
    %v1406 = vsel %vm65, %v1404, 0.0
    %v1407 = vsel %vm65, %v1405, 0.0
    %1408 = vst [vmem:[#allocation7] sm:$0xff] %v1406
    %1409 = vst [vmem:[#allocation7 + $0x8] sm:$0xff] %v1407
    // Predicated region
    $region46: #{tpu_custom_call.1} parent=1 // pred_check
      _
    $region47: #{tpu_custom_call.1} parent=1 // pred_check_branch
      %1411 = sbr.rel (0) target = $region49
    $region48: #{tpu_custom_call.1} parent=1 // pred_region
      %s1413 = ssub.s32 256, 256
      %1414 = vsyncadd [#allocation4], %s1413
      %s1415 = sshll.u32 [#allocation7], 4
      %s1416 = int_to_ptr.vmem [resolvable:$true] %s1415
      %1421 = dma.vmem_to_hbm [thread:$0]  %s1416, 256, %s9, [#allocation4], 128, 128, 8
    $region49: #{tpu_custom_call.1} parent=1 // pred_fallthru
      _
    // Predicated region
    $region50: #{tpu_custom_call.1} parent=1 // pred_check
      _
    $region51: #{tpu_custom_call.1} parent=1 // pred_check_branch
      %1423 = sbr.rel (0) target = $region53
    $region52: #{tpu_custom_call.1} parent=1 // pred_region
      %1424 = dma.done [#allocation4], 256
    $region53: #{tpu_custom_call.1} parent=1 // pred_fallthru
      _
    %1425 = vsyncpa [#allocation3], 1
    %1426 = vsyncpa [#allocation6], 1
    %1427 = vsyncpa [#allocation4], 1

</llo_original>
